<compile_context>
chip_gen: v6e
topology: v6e:2x2x1
jax: 0.10.0
libtpu: 0.0.40
codegen_flags: <defaults>
</compile_context>

<pallas_src>
import jax
import jax.numpy as jnp
from jax.experimental import pallas as pl
from jax.experimental.pallas import tpu as pltpu

N_FILTERS = (64, 128, 128, 256)
LATENT_DIM = 128
Z_DIM = 64
CIN = 3
CIN_PAD = 8              # zero-pad input channels 3 -> 8 for the first matmul
COUT0_PAD = 128          # zero-pad layer-0 Cout 64 -> 128 (lane-dense, K=128 for layer 1)
OUT_PAD = 4 * Z_DIM      # packed output: [z | mu | logvar | zeros] = 256 lanes
BN_EPS = 1e-5


def _rup(x, m):
    """Round x up to a multiple of m."""
    return -(-x // m) * m


def encoder_kernel(x_ref,
                   w1, s1, w2, s2, w3, s3, w4, s4, w5, s5,
                   w_head, b_head, noise_ref, out_ref, feat_acc):
    # x_ref: (TB, NP, CIN_PAD) bf16 -- one batch tile x one point tile.
    p = pl.program_id(1)
    tb, np_tile, _ = x_ref.shape

    @pl.when(p == 0)
    def _():
        feat_acc[...] = jnp.full(feat_acc.shape, -jnp.inf, feat_acc.dtype)

    # Five (Conv1d k=1 -> folded BN -> ReLU) stages as one (TB*NP, C) matmul
    # chain: bf16 inputs/weights, f32 accumulation, bf16 inter-layer activations.
    h = x_ref[...].reshape(tb * np_tile, CIN_PAD)
    for w, s in ((w1, s1), (w2, s2), (w3, s3), (w4, s4), (w5, s5)):
        acc = jnp.dot(h, w[...], preferred_element_type=jnp.float32)
        h = jnp.maximum(acc + s[...], 0.0).astype(jnp.bfloat16)

    # torch.max(x, dim=2)[0]: running max over point tiles (f32 accumulator).
    part = jnp.max(h.reshape(tb, np_tile, LATENT_DIM), axis=1)
    feat_acc[...] = jnp.maximum(feat_acc[...], part.astype(jnp.float32))

    # Last point tile: fused fc_mu/fc_logvar head, reparameterization, store.
    @pl.when(p == pl.num_programs(1) - 1)
    def _():
        feat = feat_acc[...].astype(jnp.bfloat16)
        head = jnp.dot(feat, w_head[...],
                       preferred_element_type=jnp.float32) + b_head[...]
        mu = head[:, :Z_DIM]
        lv = head[:, Z_DIM:]
        z = mu + jnp.exp(lv * 0.5) * noise_ref[...]
        # head already holds [mu | logvar] contiguously -> 3-piece lane-dense slab.
        pad = jnp.zeros((tb, OUT_PAD - 3 * Z_DIM), jnp.float32)
        out_ref[...] = jnp.concatenate([z, head, pad], axis=-1)


def init_params(key):
    """Deterministic synthetic parameters matching the PyTorch module shapes."""
    sizes = [CIN] + list(N_FILTERS) + [LATENT_DIM]
    params = {"layers": [], "fc_mu": None, "fc_logvar": None}
    for i in range(len(sizes) - 1):
        cin, cout = sizes[i], sizes[i + 1]
        key, k_w, k_b, k_g, k_bb = jax.random.split(key, 5)
        W = jax.random.normal(k_w, (cin, cout), jnp.float32) * 0.1         # conv weight (k=1)
        b = jax.random.normal(k_b, (cout,), jnp.float32) * 0.05            # conv bias
        gamma = 1.0 + 0.1 * jax.random.normal(k_g, (cout,), jnp.float32)   # BN weight
        beta = 0.05 * jax.random.normal(k_bb, (cout,), jnp.float32)        # BN bias
        rmean = jnp.zeros((cout,), jnp.float32)                            # BN running_mean
        rvar = jnp.ones((cout,), jnp.float32)                              # BN running_var
        params["layers"].append((W, b, gamma, beta, rmean, rvar))
    key, k1, k2, k3, k4 = jax.random.split(key, 5)
    params["fc_mu"] = (jax.random.normal(k1, (LATENT_DIM, Z_DIM), jnp.float32) * 0.1,
                       jax.random.normal(k2, (Z_DIM,), jnp.float32) * 0.05)
    params["fc_logvar"] = (jax.random.normal(k3, (LATENT_DIM, Z_DIM), jnp.float32) * 0.1,
                           jax.random.normal(k4, (Z_DIM,), jnp.float32) * 0.05)
    return params


def prepare_params(params):
    """Fold eval-mode BN, pad layer-0 Cin 3->8 and Cout 64->128 (zero, exact),
    pad layer-1 Cin to match, fuse fc_mu/fc_logvar, pre-cast weights to bf16
    (shifts / head bias stay f32)."""
    flat = []
    for i, (W, b, gamma, beta, rmean, rvar) in enumerate(params["layers"]):
        scale = gamma / jnp.sqrt(rvar + BN_EPS)
        Wf = W * scale[None, :]
        shift = (b - rmean) * scale + beta
        if i == 0:
            Wf = jnp.pad(Wf, ((0, CIN_PAD - Wf.shape[0]),
                              (0, COUT0_PAD - Wf.shape[1])))
            shift = jnp.pad(shift, (0, COUT0_PAD - shift.shape[0]))
        if i == 1:
            Wf = jnp.pad(Wf, ((0, COUT0_PAD - Wf.shape[0]), (0, 0)))
        flat += [Wf.astype(jnp.bfloat16), shift[None, :].astype(jnp.float32)]
    wmu, bmu = params["fc_mu"]
    wlv, blv = params["fc_logvar"]
    flat += [jnp.concatenate([wmu, wlv], axis=1).astype(jnp.bfloat16),   # (latent, 2*Z)
             jnp.concatenate([bmu, blv])[None, :].astype(jnp.float32)]   # (1, 2*Z)
    return flat


def _vmem_capacity_bytes():
    """Physical VMEM of the attached chip; conservative (v7x-sized) fallback."""
    try:
        cap = int(pltpu.get_tpu_info().vmem_capacity_bytes)
        if cap > 0:
            return cap
    except Exception:
        pass
    return 64 * 1024 * 1024


def _choose_tiles(batch, npts, vmem_capacity):
    """Pick (tb, np_tile, b_pad, n_pad).

    VMEM accounting per grid step (M = tb * np_tile matmul rows):
      * input tile  : 8 channels lane-padded to 128 in VMEM, bf16, double
                      buffered                       -> 2 * 128 * 2 B / row
      * activations : widest 256-lane layer; one f32 accumulator plus two
                      bf16 activation copies live    -> 256 * (4+2+2) B / row
      * constants   : ~0.5 MiB bf16 weights (double buffered) + slack
    Budget ~1/4 of physical VMEM for this live set (generation-aware).
    """
    budget = max(vmem_capacity // 4, 4 * 1024 * 1024)
    const_bytes = 2 * 1024 * 1024
    per_row = 2 * 128 * 2 + 256 * 8
    m_max = max(64, (budget - const_bytes) // per_row)

    n_pad8 = _rup(npts, 8)
    if 8 * n_pad8 <= m_max:                      # full point dim fits at tb >= 8
        np_tile = n_pad8
    else:                                        # tile the points axis
        np_tile = max(8, ((m_max // 8) // 8) * 8)
    n_pad = _rup(n_pad8, np_tile)

    b_pad8 = _rup(batch, 8)
    tb = min(b_pad8, max(8, ((m_max // np_tile) // 8) * 8))
    # v7x has 2 TensorCores: keep >= 2 steps on the parallel batch axis
    # whenever the (padded) batch is large enough to split.
    if b_pad8 > 8 and -(-b_pad8 // tb) < 2:
        tb = max(8, (-(-b_pad8 // 16)) * 8)
    b_pad = _rup(b_pad8, tb)
    return tb, np_tile, b_pad, n_pad


@jax.jit
def encoder_pointnet_forward(x_ncl, noise, *flat_params):
    """x_ncl: (B, 3, N_points) PyTorch NCL layout.  Returns (z, mu, logvar)."""
    B, cin, npts = x_ncl.shape

    vmem_cap = _vmem_capacity_bytes()
    tb, np_tile, b_pad, n_pad = _choose_tiles(B, npts, vmem_cap)

    # Channels-last, zero-pad Cin 3->8, edge-pad points (max-invariant),
    # zero-pad batch, single bf16 cast (fused by XLA).
    x = jnp.transpose(x_ncl, (0, 2, 1))
    x = jnp.pad(x, ((0, 0), (0, 0), (0, CIN_PAD - cin)))
    if n_pad > npts:
        x = jnp.pad(x, ((0, 0), (0, n_pad - npts), (0, 0)), mode="edge")
    if b_pad > B:
        x = jnp.pad(x, ((0, b_pad - B), (0, 0), (0, 0)))
        noise = jnp.pad(noise, ((0, b_pad - B), (0, 0)))
    x = x.astype(jnp.bfloat16)

    grid = (b_pad // tb, n_pad // np_tile)

    def const_spec(q):
        return pl.BlockSpec(q.shape, lambda b, p: (0,) * q.ndim)

    in_specs = [pl.BlockSpec((tb, np_tile, CIN_PAD), lambda b, p: (b, p, 0))]
    in_specs += [const_spec(q) for q in flat_params]
    in_specs += [pl.BlockSpec((tb, Z_DIM), lambda b, p: (b, 0))]

    out_shape = jax.ShapeDtypeStruct((b_pad, OUT_PAD), jnp.float32)
    out_specs = pl.BlockSpec((tb, OUT_PAD), lambda b, p: (b, 0))

    sizes = [CIN_PAD, COUT0_PAD, 128, 128, 256, LATENT_DIM]
    m_total = b_pad * n_pad
    flops = 2 * m_total * sum(a * c for a, c in zip(sizes[:-1], sizes[1:]))
    flops += 2 * b_pad * LATENT_DIM * (2 * Z_DIM)
    bytes_accessed = (2 * x.size + 4 * noise.size + 4 * b_pad * OUT_PAD
                      + sum(int(q.size) * q.dtype.itemsize for q in flat_params))
    cost = pl.CostEstimate(flops=int(flops), transcendentals=b_pad * Z_DIM,
                           bytes_accessed=int(bytes_accessed))

    # Generation-aware scoped-VMEM limit: ~48 MiB on v7x (64 MiB physical),
    # 96 MiB on v5e/v6e (128 MiB physical, default scoped 16/32 MiB).
    vmem_limit = min(3 * vmem_cap // 4, 96 * 1024 * 1024)

    packed = pl.pallas_call(
        encoder_kernel,
        out_shape=out_shape,
        grid=grid,
        in_specs=in_specs,
        out_specs=out_specs,
        scratch_shapes=[pltpu.VMEM((tb, LATENT_DIM), jnp.float32)],
        compiler_params=pltpu.CompilerParams(
            dimension_semantics=("parallel", "arbitrary"),
            vmem_limit_bytes=vmem_limit),
        cost_estimate=cost,
    )(x, *flat_params, noise)

    z = packed[:B, :Z_DIM]
    mu = packed[:B, Z_DIM:2 * Z_DIM]
    logvar = packed[:B, 2 * Z_DIM:3 * Z_DIM]
    return z, mu, logvar


if __name__ == "__main__":
    key = jax.random.PRNGKey(0)
    key, k_x, k_noise, k_params = jax.random.split(key, 4)

    B, N_POINTS = 2, 16
    x = jax.random.normal(k_x, (B, CIN, N_POINTS), jnp.float32)   # NCL like PyTorch
    noise = jax.random.normal(k_noise, (B, Z_DIM), jnp.float32)   # replaces torch.normal(...).cuda()

    params = init_params(k_params)
    flat_params = prepare_params(params)

    z, mu, logvar = encoder_pointnet_forward(x, noise, *flat_params)
    jax.block_until_ready((z, mu, logvar))

    # Pure-JAX reference of the same (bf16-matmul, f32-accumulate) math.
    xt = jnp.pad(jnp.transpose(x, (0, 2, 1)), ((0, 0), (0, 0), (0, CIN_PAD - CIN)))
    h = xt.reshape(B * N_POINTS, CIN_PAD).astype(jnp.bfloat16)
    for i in range(5):
        W, s = flat_params[2 * i], flat_params[2 * i + 1]
        h = jnp.maximum(
            jnp.dot(h, W, preferred_element_type=jnp.float32) + s, 0.0
        ).astype(jnp.bfloat16)
    feat = jnp.max(h.reshape(B, N_POINTS, LATENT_DIM), axis=1)
    w_head, b_head = flat_params[10], flat_params[11]
    head = jnp.dot(feat, w_head, preferred_element_type=jnp.float32) + b_head
    mu_ref, lv_ref = head[:, :Z_DIM], head[:, Z_DIM:]
    z_ref = mu_ref + jnp.exp(lv_ref * 0.5) * noise

    assert jnp.allclose(mu, mu_ref, atol=1e-3), "mu mismatch"
    assert jnp.allclose(logvar, lv_ref, atol=1e-3), "logvar mismatch"
    assert jnp.allclose(z, z_ref, atol=1e-3), "z mismatch"

    print("KERNEL_OK")
</pallas_src>

<mosaic_0001>
module attributes {stable_mosaic.version = 11 : i64} {
  func.func @encoder_kernel(%arg0: i32, %arg1: i32, %arg2: memref<8x16x8xbf16, #tpu.memory_space<vmem>>, %arg3: memref<8x128xbf16, #tpu.memory_space<vmem>>, %arg4: memref<1x128xf32, #tpu.memory_space<vmem>>, %arg5: memref<128x128xbf16, #tpu.memory_space<vmem>>, %arg6: memref<1x128xf32, #tpu.memory_space<vmem>>, %arg7: memref<128x128xbf16, #tpu.memory_space<vmem>>, %arg8: memref<1x128xf32, #tpu.memory_space<vmem>>, %arg9: memref<128x256xbf16, #tpu.memory_space<vmem>>, %arg10: memref<1x256xf32, #tpu.memory_space<vmem>>, %arg11: memref<256x128xbf16, #tpu.memory_space<vmem>>, %arg12: memref<1x128xf32, #tpu.memory_space<vmem>>, %arg13: memref<128x128xbf16, #tpu.memory_space<vmem>>, %arg14: memref<1x128xf32, #tpu.memory_space<vmem>>, %arg15: memref<8x64xf32, #tpu.memory_space<vmem>>, %arg16: memref<8x256xf32, #tpu.memory_space<vmem>>, %arg17: memref<8x128xf32, #tpu.memory_space<vmem>>) attributes {dimension_semantics = [#tpu.dimension_semantics<parallel>, #tpu.dimension_semantics<arbitrary>], iteration_bounds = array<i64: 1, 1>, scalar_prefetch = 0 : i64, scratch_operands = 1 : i64, tpu.core_type = #tpu.core_type<tc>, window_params = [{transform_indices = @transform_0, window_bounds = array<i64: 8, 16, 8>}, {pipeline_mode = #tpu.pipeline_mode<synchronous>, transform_indices = @transform_1, window_bounds = array<i64: 8, 128>}, {pipeline_mode = #tpu.pipeline_mode<synchronous>, transform_indices = @transform_2, window_bounds = array<i64: 1, 128>}, {pipeline_mode = #tpu.pipeline_mode<synchronous>, transform_indices = @transform_3, window_bounds = array<i64: 128, 128>}, {pipeline_mode = #tpu.pipeline_mode<synchronous>, transform_indices = @transform_4, window_bounds = array<i64: 1, 128>}, {pipeline_mode = #tpu.pipeline_mode<synchronous>, transform_indices = @transform_5, window_bounds = array<i64: 128, 128>}, {pipeline_mode = #tpu.pipeline_mode<synchronous>, transform_indices = @transform_6, window_bounds = array<i64: 1, 128>}, {pipeline_mode = #tpu.pipeline_mode<synchronous>, transform_indices = @transform_7, window_bounds = array<i64: 128, 256>}, {pipeline_mode = #tpu.pipeline_mode<synchronous>, transform_indices = @transform_8, window_bounds = array<i64: 1, 256>}, {pipeline_mode = #tpu.pipeline_mode<synchronous>, transform_indices = @transform_9, window_bounds = array<i64: 256, 128>}, {pipeline_mode = #tpu.pipeline_mode<synchronous>, transform_indices = @transform_10, window_bounds = array<i64: 1, 128>}, {pipeline_mode = #tpu.pipeline_mode<synchronous>, transform_indices = @transform_11, window_bounds = array<i64: 128, 128>}, {pipeline_mode = #tpu.pipeline_mode<synchronous>, transform_indices = @transform_12, window_bounds = array<i64: 1, 128>}, {transform_indices = @transform_13, window_bounds = array<i64: 8, 64>}, {transform_indices = @transform_14, window_bounds = array<i64: 8, 256>}]} {
    %c0_i32 = arith.constant 0 : i32
    %0 = arith.cmpi eq, %arg1, %c0_i32 : i32
    %1 = arith.extui %0 : i1 to i32
    %c0_i32_0 = arith.constant 0 : i32
    %2 = arith.cmpi ne, %1, %c0_i32_0 : i32
    scf.if %2 {
      %cst_39 = arith.constant 0xFF800000 : f32
      %54 = vector.broadcast %cst_39 : f32 to vector<8x128xf32>
      %c0_40 = arith.constant 0 : index
      %c0_41 = arith.constant 0 : index
      %55 = vector.load %arg17[%c0_40, %c0_41] : memref<8x128xf32, #tpu.memory_space<vmem>>, vector<8x128xf32>
      tpu.vector_store %arg17[%c0_40, %c0_41], %54 {strides = array<i32>} : memref<8x128xf32, #tpu.memory_space<vmem>>, vector<8x128xf32>,
    } else {
    }
    %c0 = arith.constant 0 : index
    %c0_1 = arith.constant 0 : index
    %c0_2 = arith.constant 0 : index
    %3 = vector.load %arg2[%c0, %c0_1, %c0_2] : memref<8x16x8xbf16, #tpu.memory_space<vmem>>, vector<8x16x8xbf16>
    %4 = vector.shape_cast %3 : vector<8x16x8xbf16> to vector<128x8xbf16>
    %c0_3 = arith.constant 0 : index
    %c0_4 = arith.constant 0 : index
    %5 = vector.load %arg3[%c0_3, %c0_4] : memref<8x128xbf16, #tpu.memory_space<vmem>>, vector<8x128xbf16>
    %cst = arith.constant dense<0.000000e+00> : vector<128x128xf32>
    %6 = tpu.matmul %4, %5, %cst {dimension_numbers = #tpu.dot_dimension_numbers<[1], [0], [0], [1], [0, 0, 1, 1], [], []>} : vector<128x8xbf16>, vector<8x128xbf16>, vector<128x128xf32> -> vector<128x128xf32>
    %c0_5 = arith.constant 0 : index
    %c0_6 = arith.constant 0 : index
    %7 = vector.load %arg4[%c0_5, %c0_6] : memref<1x128xf32, #tpu.memory_space<vmem>>, vector<1x128xf32>
    %8 = vector.broadcast %7 : vector<1x128xf32> to vector<128x128xf32>
    %9 = arith.addf %6, %8 : vector<128x128xf32>
    %cst_7 = arith.constant 0.000000e+00 : f32
    %10 = vector.broadcast %cst_7 : f32 to vector<128x128xf32>
    %11 = arith.maximumf %9, %10 : vector<128x128xf32>
    %12 = arith.truncf %11 : vector<128x128xf32> to vector<128x128xbf16>
    %c0_8 = arith.constant 0 : index
    %c0_9 = arith.constant 0 : index
    %13 = vector.load %arg5[%c0_8, %c0_9] : memref<128x128xbf16, #tpu.memory_space<vmem>>, vector<128x128xbf16>
    %cst_10 = arith.constant dense<0.000000e+00> : vector<128x128xf32>
    %14 = tpu.matmul %12, %13, %cst_10 {dimension_numbers = #tpu.dot_dimension_numbers<[1], [0], [0], [1], [0, 0, 1, 1], [], []>} : vector<128x128xbf16>, vector<128x128xbf16>, vector<128x128xf32> -> vector<128x128xf32>
    %c0_11 = arith.constant 0 : index
    %c0_12 = arith.constant 0 : index
    %15 = vector.load %arg6[%c0_11, %c0_12] : memref<1x128xf32, #tpu.memory_space<vmem>>, vector<1x128xf32>
    %16 = vector.broadcast %15 : vector<1x128xf32> to vector<128x128xf32>
    %17 = arith.addf %14, %16 : vector<128x128xf32>
    %cst_13 = arith.constant 0.000000e+00 : f32
    %18 = vector.broadcast %cst_13 : f32 to vector<128x128xf32>
    %19 = arith.maximumf %17, %18 : vector<128x128xf32>
    %20 = arith.truncf %19 : vector<128x128xf32> to vector<128x128xbf16>
    %c0_14 = arith.constant 0 : index
    %c0_15 = arith.constant 0 : index
    %21 = vector.load %arg7[%c0_14, %c0_15] : memref<128x128xbf16, #tpu.memory_space<vmem>>, vector<128x128xbf16>
    %cst_16 = arith.constant dense<0.000000e+00> : vector<128x128xf32>
    %22 = tpu.matmul %20, %21, %cst_16 {dimension_numbers = #tpu.dot_dimension_numbers<[1], [0], [0], [1], [0, 0, 1, 1], [], []>} : vector<128x128xbf16>, vector<128x128xbf16>, vector<128x128xf32> -> vector<128x128xf32>
    %c0_17 = arith.constant 0 : index
    %c0_18 = arith.constant 0 : index
    %23 = vector.load %arg8[%c0_17, %c0_18] : memref<1x128xf32, #tpu.memory_space<vmem>>, vector<1x128xf32>
    %24 = vector.broadcast %23 : vector<1x128xf32> to vector<128x128xf32>
    %25 = arith.addf %22, %24 : vector<128x128xf32>
    %cst_19 = arith.constant 0.000000e+00 : f32
    %26 = vector.broadcast %cst_19 : f32 to vector<128x128xf32>
    %27 = arith.maximumf %25, %26 : vector<128x128xf32>
    %28 = arith.truncf %27 : vector<128x128xf32> to vector<128x128xbf16>
    %c0_20 = arith.constant 0 : index
    %c0_21 = arith.constant 0 : index
    %29 = vector.load %arg9[%c0_20, %c0_21] : memref<128x256xbf16, #tpu.memory_space<vmem>>, vector<128x256xbf16>
    %cst_22 = arith.constant dense<0.000000e+00> : vector<128x256xf32>
    %30 = tpu.matmul %28, %29, %cst_22 {dimension_numbers = #tpu.dot_dimension_numbers<[1], [0], [0], [1], [0, 0, 1, 1], [], []>} : vector<128x128xbf16>, vector<128x256xbf16>, vector<128x256xf32> -> vector<128x256xf32>
    %c0_23 = arith.constant 0 : index
    %c0_24 = arith.constant 0 : index
    %31 = vector.load %arg10[%c0_23, %c0_24] : memref<1x256xf32, #tpu.memory_space<vmem>>, vector<1x256xf32>
    %32 = vector.broadcast %31 : vector<1x256xf32> to vector<128x256xf32>
    %33 = arith.addf %30, %32 : vector<128x256xf32>
    %cst_25 = arith.constant 0.000000e+00 : f32
    %34 = vector.broadcast %cst_25 : f32 to vector<128x256xf32>
    %35 = arith.maximumf %33, %34 : vector<128x256xf32>
    %36 = arith.truncf %35 : vector<128x256xf32> to vector<128x256xbf16>
    %c0_26 = arith.constant 0 : index
    %c0_27 = arith.constant 0 : index
    %37 = vector.load %arg11[%c0_26, %c0_27] : memref<256x128xbf16, #tpu.memory_space<vmem>>, vector<256x128xbf16>
    %cst_28 = arith.constant dense<0.000000e+00> : vector<128x128xf32>
    %38 = tpu.matmul %36, %37, %cst_28 {dimension_numbers = #tpu.dot_dimension_numbers<[1], [0], [0], [1], [0, 0, 1, 1], [], []>} : vector<128x256xbf16>, vector<256x128xbf16>, vector<128x128xf32> -> vector<128x128xf32>
    %c0_29 = arith.constant 0 : index
    %c0_30 = arith.constant 0 : index
    %39 = vector.load %arg12[%c0_29, %c0_30] : memref<1x128xf32, #tpu.memory_space<vmem>>, vector<1x128xf32>
    %40 = vector.broadcast %39 : vector<1x128xf32> to vector<128x128xf32>
    %41 = arith.addf %38, %40 : vector<128x128xf32>
    %cst_31 = arith.constant 0.000000e+00 : f32
    %42 = vector.broadcast %cst_31 : f32 to vector<128x128xf32>
    %43 = arith.maximumf %41, %42 : vector<128x128xf32>
    %44 = arith.truncf %43 : vector<128x128xf32> to vector<128x128xbf16>
    %45 = vector.shape_cast %44 : vector<128x128xbf16> to vector<8x16x128xbf16>
    %cst_32 = arith.constant dense<0xFF80> : vector<8x128xbf16>
    %46 = vector.multi_reduction <maximumf>, %45, %cst_32 [1] : vector<8x16x128xbf16> to vector<8x128xbf16>
    %c0_33 = arith.constant 0 : index
    %c0_34 = arith.constant 0 : index
    %47 = vector.load %arg17[%c0_33, %c0_34] : memref<8x128xf32, #tpu.memory_space<vmem>>, vector<8x128xf32>
    %48 = arith.extf %46 : vector<8x128xbf16> to vector<8x128xf32>
    %49 = arith.maximumf %47, %48 : vector<8x128xf32>
    %c0_35 = arith.constant 0 : index
    %c0_36 = arith.constant 0 : index
    %50 = vector.load %arg17[%c0_35, %c0_36] : memref<8x128xf32, #tpu.memory_space<vmem>>, vector<8x128xf32>
    tpu.vector_store %arg17[%c0_35, %c0_36], %49 {strides = array<i32>} : memref<8x128xf32, #tpu.memory_space<vmem>>, vector<8x128xf32>,
    %c0_i32_37 = arith.constant 0 : i32
    %51 = arith.cmpi eq, %arg1, %c0_i32_37 : i32
    %52 = arith.extui %51 : i1 to i32
    %c0_i32_38 = arith.constant 0 : i32
    %53 = arith.cmpi ne, %52, %c0_i32_38 : i32
    scf.if %53 {
      %c0_39 = arith.constant 0 : index
      %c0_40 = arith.constant 0 : index
      %54 = vector.load %arg17[%c0_39, %c0_40] : memref<8x128xf32, #tpu.memory_space<vmem>>, vector<8x128xf32>
      %55 = arith.truncf %54 : vector<8x128xf32> to vector<8x128xbf16>
      %c0_41 = arith.constant 0 : index
      %c0_42 = arith.constant 0 : index
      %56 = vector.load %arg13[%c0_41, %c0_42] : memref<128x128xbf16, #tpu.memory_space<vmem>>, vector<128x128xbf16>
      %cst_43 = arith.constant dense<0.000000e+00> : vector<8x128xf32>
      %57 = tpu.matmul %55, %56, %cst_43 {dimension_numbers = #tpu.dot_dimension_numbers<[1], [0], [0], [1], [0, 0, 1, 1], [], []>} : vector<8x128xbf16>, vector<128x128xbf16>, vector<8x128xf32> -> vector<8x128xf32>
      %c0_44 = arith.constant 0 : index
      %c0_45 = arith.constant 0 : index
      %58 = vector.load %arg14[%c0_44, %c0_45] : memref<1x128xf32, #tpu.memory_space<vmem>>, vector<1x128xf32>
      %59 = vector.broadcast %58 : vector<1x128xf32> to vector<8x128xf32>
      %60 = arith.addf %57, %59 : vector<8x128xf32>
      %61 = vector.extract_strided_slice %60 {offsets = [0, 0], sizes = [8, 64], strides = [1, 1]} : vector<8x128xf32> to vector<8x64xf32>
      %62 = vector.extract_strided_slice %60 {offsets = [0, 64], sizes = [8, 64], strides = [1, 1]} : vector<8x128xf32> to vector<8x64xf32>
      %cst_46 = arith.constant 5.000000e-01 : f32
      %63 = vector.broadcast %cst_46 : f32 to vector<8x64xf32>
      %64 = arith.mulf %62, %63 : vector<8x64xf32>
      %65 = math.exp %64 : vector<8x64xf32>
      %c0_47 = arith.constant 0 : index
      %c0_48 = arith.constant 0 : index
      %66 = vector.load %arg15[%c0_47, %c0_48] : memref<8x64xf32, #tpu.memory_space<vmem>>, vector<8x64xf32>
      %67 = arith.mulf %65, %66 : vector<8x64xf32>
      %68 = arith.addf %61, %67 : vector<8x64xf32>
      %cst_49 = arith.constant 0.000000e+00 : f32
      %69 = vector.broadcast %cst_49 : f32 to vector<8x64xf32>
      %70 = tpu.concatenate %68, %60, %69 in 1 : vector<8x64xf32>, vector<8x128xf32>, vector<8x64xf32> -> vector<8x256xf32>
      %c0_50 = arith.constant 0 : index
      %c0_51 = arith.constant 0 : index
      %71 = vector.load %arg16[%c0_50, %c0_51] : memref<8x256xf32, #tpu.memory_space<vmem>>, vector<8x256xf32>
      tpu.vector_store %arg16[%c0_50, %c0_51], %70 {strides = array<i32>} : memref<8x256xf32, #tpu.memory_space<vmem>>, vector<8x256xf32>,
    } else {
    }
    return
  }
  func.func @transform_0(%arg0: i32, %arg1: i32) -> (i32, i32, i32) {
    %c0_i32 = arith.constant 0 : i32
    %c0_i32_0 = arith.constant 0 : i32
    return %arg0, %arg1, %c0_i32 : i32, i32, i32
  }
  func.func @transform_1(%arg0: i32, %arg1: i32) -> (i32, i32) {
    %c0_i32 = arith.constant 0 : i32
    %c0_i32_0 = arith.constant 0 : i32
    %c0_i32_1 = arith.constant 0 : i32
    return %c0_i32, %c0_i32_0 : i32, i32
  }
  func.func @transform_2(%arg0: i32, %arg1: i32) -> (i32, i32) {
    %c0_i32 = arith.constant 0 : i32
    %c0_i32_0 = arith.constant 0 : i32
    %c0_i32_1 = arith.constant 0 : i32
    return %c0_i32, %c0_i32_0 : i32, i32
  }
  func.func @transform_3(%arg0: i32, %arg1: i32) -> (i32, i32) {
    %c0_i32 = arith.constant 0 : i32
    %c0_i32_0 = arith.constant 0 : i32
    %c0_i32_1 = arith.constant 0 : i32
    return %c0_i32, %c0_i32_0 : i32, i32
  }
  func.func @transform_4(%arg0: i32, %arg1: i32) -> (i32, i32) {
    %c0_i32 = arith.constant 0 : i32
    %c0_i32_0 = arith.constant 0 : i32
    %c0_i32_1 = arith.constant 0 : i32
    return %c0_i32, %c0_i32_0 : i32, i32
  }
  func.func @transform_5(%arg0: i32, %arg1: i32) -> (i32, i32) {
    %c0_i32 = arith.constant 0 : i32
    %c0_i32_0 = arith.constant 0 : i32
    %c0_i32_1 = arith.constant 0 : i32
    return %c0_i32, %c0_i32_0 : i32, i32
  }
  func.func @transform_6(%arg0: i32, %arg1: i32) -> (i32, i32) {
    %c0_i32 = arith.constant 0 : i32
    %c0_i32_0 = arith.constant 0 : i32
    %c0_i32_1 = arith.constant 0 : i32
    return %c0_i32, %c0_i32_0 : i32, i32
  }
  func.func @transform_7(%arg0: i32, %arg1: i32) -> (i32, i32) {
    %c0_i32 = arith.constant 0 : i32
    %c0_i32_0 = arith.constant 0 : i32
    %c0_i32_1 = arith.constant 0 : i32
    return %c0_i32, %c0_i32_0 : i32, i32
  }
  func.func @transform_8(%arg0: i32, %arg1: i32) -> (i32, i32) {
    %c0_i32 = arith.constant 0 : i32
    %c0_i32_0 = arith.constant 0 : i32
    %c0_i32_1 = arith.constant 0 : i32
    return %c0_i32, %c0_i32_0 : i32, i32
  }
  func.func @transform_9(%arg0: i32, %arg1: i32) -> (i32, i32) {
    %c0_i32 = arith.constant 0 : i32
    %c0_i32_0 = arith.constant 0 : i32
    %c0_i32_1 = arith.constant 0 : i32
    return %c0_i32, %c0_i32_0 : i32, i32
  }
  func.func @transform_10(%arg0: i32, %arg1: i32) -> (i32, i32) {
    %c0_i32 = arith.constant 0 : i32
    %c0_i32_0 = arith.constant 0 : i32
    %c0_i32_1 = arith.constant 0 : i32
    return %c0_i32, %c0_i32_0 : i32, i32
  }
  func.func @transform_11(%arg0: i32, %arg1: i32) -> (i32, i32) {
    %c0_i32 = arith.constant 0 : i32
    %c0_i32_0 = arith.constant 0 : i32
    %c0_i32_1 = arith.constant 0 : i32
    return %c0_i32, %c0_i32_0 : i32, i32
  }
  func.func @transform_12(%arg0: i32, %arg1: i32) -> (i32, i32) {
    %c0_i32 = arith.constant 0 : i32
    %c0_i32_0 = arith.constant 0 : i32
    %c0_i32_1 = arith.constant 0 : i32
    return %c0_i32, %c0_i32_0 : i32, i32
  }
  func.func @transform_13(%arg0: i32, %arg1: i32) -> (i32, i32) {
    %c0_i32 = arith.constant 0 : i32
    %c0_i32_0 = arith.constant 0 : i32
    return %arg0, %c0_i32 : i32, i32
  }
  func.func @transform_14(%arg0: i32, %arg1: i32) -> (i32, i32) {
    %c0_i32 = arith.constant 0 : i32
    %c0_i32_0 = arith.constant 0 : i32
    return %arg0, %c0_i32 : i32, i32
  }
}

</mosaic_0001>

<llo_original>
// kernel: encoder_pointnet_forward.1
$region0: #{encoder_pointnet_forward.1}
  #allocation0 [shape = 'u32[]', space=smem, size = 0x4, offset = 0x4, fixed_abs, tag = 'smem constant byte address 0x4 - core index']
  #allocation1 [shape = 'u32[144,128]{1,0:T(1,128)}', space=vmem, size = 0x12000, scoped, tag = 'internal scratch']
  #allocation2 [shape = 'f32[8,128]{1,0:T(8,128)}', space=vmem, size = 0x1000, scoped, tag = 'scratch operand']
  %s0 = inlined_call_operand.vmem [shape: bf16[8,16,8], index: 0, kind: input, shape index: {}]
  %s1 = inlined_call_operand.vmem [shape: bf16[8,128], index: 1, kind: input, shape index: {}]
  %s2 = inlined_call_operand.vmem [shape: f32[1,128], index: 2, kind: input, shape index: {}]
  %s3 = inlined_call_operand.hbm [shape: bf16[128,128], index: 3, kind: input, shape index: {}]
  %s4 = inlined_call_operand.vmem [shape: f32[1,128], index: 4, kind: input, shape index: {}]
  %s5 = inlined_call_operand.hbm [shape: bf16[128,128], index: 5, kind: input, shape index: {}]
  %s6 = inlined_call_operand.hbm [shape: f32[1,128], index: 6, kind: input, shape index: {}]
  %s7 = inlined_call_operand.vmem [shape: bf16[128,256], index: 7, kind: input, shape index: {}]
  %s8 = inlined_call_operand.vmem [shape: f32[1,256], index: 8, kind: input, shape index: {}]
  %s9 = inlined_call_operand.hbm [shape: bf16[256,128], index: 9, kind: input, shape index: {}]
  %s10 = inlined_call_operand.vmem [shape: f32[1,128], index: 10, kind: input, shape index: {}]
  %s11 = inlined_call_operand.hbm [shape: bf16[128,128], index: 11, kind: input, shape index: {}]
  %s12 = inlined_call_operand.vmem [shape: f32[1,128], index: 12, kind: input, shape index: {}]
  %s13 = inlined_call_operand.vmem [shape: f32[8,64], index: 13, kind: input, shape index: {}]
  %s14 = inlined_call_operand.vmem [shape: f32[8,256], index: 14, kind: output, shape index: {}]
  %s15 = sld [smem:[#allocation0]]
  $region94: #{encoder_pointnet_forward.1} parent=0
    _
  %s17 = ssub.s32 1, %s15
  %s18 = scalar_select 0, %s17, %s15
  $region1: #{encoder_pointnet_forward.1} parent=0
    #allocation3 [shape = 'u8[32768]{0}', space=vmem, size = 0x8000, scoped, tag = 'input window, operand 3, single buffered']
    #allocation4 [shape = 's32[1]{0}', space=sflag, size = 0x4, scoped, tag = 'scoped memory for encoder_pointnet_forward.1']
    #allocation5 [shape = 'u8[32768]{0}', space=vmem, size = 0x8000, scoped, tag = 'input window, operand 5, single buffered']
    #allocation6 [shape = 's32[1]{0}', space=sflag, size = 0x4, scoped, tag = 'scoped memory for encoder_pointnet_forward.1']
    #allocation7 [shape = 'u8[512]{0}', space=vmem, size = 0x400, scoped, tag = 'input window, operand 6, single buffered']
    #allocation8 [shape = 'u8[65536]{0}', space=vmem, size = 0x10000, scoped, tag = 'input window, operand 9, single buffered']
    #allocation9 [shape = 's32[1]{0}', space=sflag, size = 0x4, scoped, tag = 'scoped memory for encoder_pointnet_forward.1']
    #allocation10 [shape = 'u8[32768]{0}', space=vmem, size = 0x8000, scoped, tag = 'input window, operand 11, single buffered']
    %19 = vsyncpa [#allocation4], 0
    %20 = vsyncpa [#allocation6], 0
    %21 = vsyncpa [#allocation9], 0
    // Predicated region
    $region2: #{encoder_pointnet_forward.1} parent=1 // pred_check
      _
    $region3: #{encoder_pointnet_forward.1} parent=1 // pred_check_branch
      %23 = sbr.rel (0) target = $region5
    $region4: #{encoder_pointnet_forward.1} parent=1 // pred_region
      _
    $region5: #{encoder_pointnet_forward.1} parent=1 // pred_fallthru
      _
    // Predicated region
    $region6: #{encoder_pointnet_forward.1} parent=1 // pred_check
      _
    $region7: #{encoder_pointnet_forward.1} parent=1 // pred_check_branch
      %25 = sbr.rel (0) target = $region9
    $region8: #{encoder_pointnet_forward.1} parent=1 // pred_region
      _
    $region9: #{encoder_pointnet_forward.1} parent=1 // pred_fallthru
      _
    // Predicated region
    $region10: #{encoder_pointnet_forward.1} parent=1 // pred_check
      _
    $region11: #{encoder_pointnet_forward.1} parent=1 // pred_check_branch
      %27 = sbr.rel (0) target = $region13
    $region12: #{encoder_pointnet_forward.1} parent=1 // pred_region
      _
    $region13: #{encoder_pointnet_forward.1} parent=1 // pred_fallthru
      _
    // Predicated region
    $region14: #{encoder_pointnet_forward.1} parent=1 // pred_check
      _
    $region15: #{encoder_pointnet_forward.1} parent=1 // pred_check_branch
      %29 = sbr.rel (0) target = $region17
    $region16: #{encoder_pointnet_forward.1} parent=1 // pred_region
      %s31 = ssub.s32 1024, 1024
      %32 = vsyncadd [#allocation4], %s31
      %s33 = sshll.u32 [#allocation3], 4
      %s34 = int_to_ptr.vmem [resolvable:$true] %s33
      %39 = dma.hbm_to_vmem [thread:$0]  %s3, 1024, %s34, [#allocation4], 64, 64, 4
    $region17: #{encoder_pointnet_forward.1} parent=1 // pred_fallthru
      _
    // Predicated region
    $region18: #{encoder_pointnet_forward.1} parent=1 // pred_check
      _
    $region19: #{encoder_pointnet_forward.1} parent=1 // pred_check_branch
      %41 = sbr.rel (0) target = $region21
    $region20: #{encoder_pointnet_forward.1} parent=1 // pred_region
      _
    $region21: #{encoder_pointnet_forward.1} parent=1 // pred_fallthru
      _
    // Predicated region
    $region22: #{encoder_pointnet_forward.1} parent=1 // pred_check
      _
    $region23: #{encoder_pointnet_forward.1} parent=1 // pred_check_branch
      %43 = sbr.rel (0) target = $region25
    $region24: #{encoder_pointnet_forward.1} parent=1 // pred_region
      %s45 = ssub.s32 1024, 1024
      %46 = vsyncadd [#allocation6], %s45
      %s47 = sshll.u32 [#allocation5], 4
      %s48 = int_to_ptr.vmem [resolvable:$true] %s47
      %53 = dma.hbm_to_vmem [thread:$0]  %s5, 1024, %s48, [#allocation6], 64, 64, 4
    $region25: #{encoder_pointnet_forward.1} parent=1 // pred_fallthru
      _
    // Predicated region
    $region26: #{encoder_pointnet_forward.1} parent=1 // pred_check
      _
    $region27: #{encoder_pointnet_forward.1} parent=1 // pred_check_branch
      %55 = sbr.rel (0) target = $region29
    $region28: #{encoder_pointnet_forward.1} parent=1 // pred_region
      %s57 = ssub.s32 16, 16
      %58 = vsyncadd [#allocation6], %s57
      %s60 = sshll.u32 [#allocation7], 4
      %s61 = int_to_ptr.vmem [resolvable:$true] %s60
      %63 = dma.hbm_to_vmem [thread:$0]  %s6, 16, %s61, [#allocation6]
    $region29: #{encoder_pointnet_forward.1} parent=1 // pred_fallthru
      _
    // Predicated region
    $region30: #{encoder_pointnet_forward.1} parent=1 // pred_check
      _
    $region31: #{encoder_pointnet_forward.1} parent=1 // pred_check_branch
      %65 = sbr.rel (0) target = $region33
    $region32: #{encoder_pointnet_forward.1} parent=1 // pred_region
      _
    $region33: #{encoder_pointnet_forward.1} parent=1 // pred_fallthru
      _
    // Predicated region
    $region34: #{encoder_pointnet_forward.1} parent=1 // pred_check
      _
    $region35: #{encoder_pointnet_forward.1} parent=1 // pred_check_branch
      %67 = sbr.rel (0) target = $region37
    $region36: #{encoder_pointnet_forward.1} parent=1 // pred_region
      _
    $region37: #{encoder_pointnet_forward.1} parent=1 // pred_fallthru
      _
    // Predicated region
    $region38: #{encoder_pointnet_forward.1} parent=1 // pred_check
      _
    $region39: #{encoder_pointnet_forward.1} parent=1 // pred_check_branch
      %69 = sbr.rel (0) target = $region41
    $region40: #{encoder_pointnet_forward.1} parent=1 // pred_region
      %s71 = ssub.s32 2048, 2048
      %72 = vsyncadd [#allocation9], %s71
      %s73 = sshll.u32 [#allocation8], 4
      %s74 = int_to_ptr.vmem [resolvable:$true] %s73
      %79 = dma.hbm_to_vmem [thread:$0]  %s9, 2048, %s74, [#allocation9], 64, 64, 4
    $region41: #{encoder_pointnet_forward.1} parent=1 // pred_fallthru
      _
    // Predicated region
    $region42: #{encoder_pointnet_forward.1} parent=1 // pred_check
      _
    $region43: #{encoder_pointnet_forward.1} parent=1 // pred_check_branch
      %81 = sbr.rel (0) target = $region45
    $region44: #{encoder_pointnet_forward.1} parent=1 // pred_region
      _
    $region45: #{encoder_pointnet_forward.1} parent=1 // pred_fallthru
      _
    // Predicated region
    $region46: #{encoder_pointnet_forward.1} parent=1 // pred_check
      _
    $region47: #{encoder_pointnet_forward.1} parent=1 // pred_check_branch
      %83 = sbr.rel (0) target = $region49
    $region48: #{encoder_pointnet_forward.1} parent=1 // pred_region
      %s85 = ssub.s32 1024, 1024
      %86 = vsyncadd [#allocation9], %s85
      %s87 = sshll.u32 [#allocation10], 4
      %s88 = int_to_ptr.vmem [resolvable:$true] %s87
      %93 = dma.hbm_to_vmem [thread:$0]  %s11, 1024, %s88, [#allocation9], 64, 64, 4
    $region49: #{encoder_pointnet_forward.1} parent=1 // pred_fallthru
      _
    // Predicated region
    $region50: #{encoder_pointnet_forward.1} parent=1 // pred_check
      _
    $region51: #{encoder_pointnet_forward.1} parent=1 // pred_check_branch
      %95 = sbr.rel (0) target = $region53
    $region52: #{encoder_pointnet_forward.1} parent=1 // pred_region
      _
    $region53: #{encoder_pointnet_forward.1} parent=1 // pred_fallthru
      _
    // Predicated region
    $region54: #{encoder_pointnet_forward.1} parent=1 // pred_check
      _
    $region55: #{encoder_pointnet_forward.1} parent=1 // pred_check_branch
      %97 = sbr.rel (0) target = $region57
    $region56: #{encoder_pointnet_forward.1} parent=1 // pred_region
      _
    $region57: #{encoder_pointnet_forward.1} parent=1 // pred_fallthru
      _
    // Predicated region
    $region58: #{encoder_pointnet_forward.1} parent=1 // pred_check
      _
    $region59: #{encoder_pointnet_forward.1} parent=1 // pred_check_branch
      %99 = sbr.rel (0) target = $region61
    $region60: #{encoder_pointnet_forward.1} parent=1 // pred_region
      %100 = dma.done [#allocation4], 1024
    $region61: #{encoder_pointnet_forward.1} parent=1 // pred_fallthru
      _
    // Predicated region
    $region62: #{encoder_pointnet_forward.1} parent=1 // pred_check
      _
    $region63: #{encoder_pointnet_forward.1} parent=1 // pred_check_branch
      %102 = sbr.rel (0) target = $region65
    $region64: #{encoder_pointnet_forward.1} parent=1 // pred_region
      %103 = dma.done [#allocation6], 1024
    $region65: #{encoder_pointnet_forward.1} parent=1 // pred_fallthru
      _
    // Predicated region
    $region66: #{encoder_pointnet_forward.1} parent=1 // pred_check
      _
    $region67: #{encoder_pointnet_forward.1} parent=1 // pred_check_branch
      %105 = sbr.rel (0) target = $region69
    $region68: #{encoder_pointnet_forward.1} parent=1 // pred_region
      %106 = dma.done [#allocation6], 16
    $region69: #{encoder_pointnet_forward.1} parent=1 // pred_fallthru
      _
    // Predicated region
    $region70: #{encoder_pointnet_forward.1} parent=1 // pred_check
      _
    $region71: #{encoder_pointnet_forward.1} parent=1 // pred_check_branch
      %108 = sbr.rel (0) target = $region73
    $region72: #{encoder_pointnet_forward.1} parent=1 // pred_region
      %109 = dma.done [#allocation9], 2048
    $region73: #{encoder_pointnet_forward.1} parent=1 // pred_fallthru
      _
    // Predicated region
    $region74: #{encoder_pointnet_forward.1} parent=1 // pred_check
      _
    $region75: #{encoder_pointnet_forward.1} parent=1 // pred_check_branch
      %111 = sbr.rel (0) target = $region77
    $region76: #{encoder_pointnet_forward.1} parent=1 // pred_region
      %112 = dma.done [#allocation9], 1024
    $region77: #{encoder_pointnet_forward.1} parent=1 // pred_fallthru
      _
    %p114 = scmp.eq.s32.totalorder 0, 0
    // Predicated region
    $region78: #{encoder_pointnet_forward.1} parent=1 // pred_check
      %p115 = pneg %p114
    $region79: #{encoder_pointnet_forward.1} parent=1 // pred_check_branch
      %117 = sbr.rel (%p115) target = $region81
    $region80: #{encoder_pointnet_forward.1} parent=1 // pred_region
      %118 = vst [vmem:[#allocation2] sm:$0xff] -inf
    $region81: #{encoder_pointnet_forward.1} parent=1 // pred_fallthru
      _
    %v119 = vld [vmem:[%s0] sm:$0xf]
    %v120 = vld [vmem:[%s0 + $0x4] sm:$0xf]
    %v121 = vld [vmem:[%s0 + $0x8] sm:$0xf]
    %v122 = vld [vmem:[%s0 + $0xc] sm:$0xf]
    %v123 = vld [vmem:[%s0 + $0x10] sm:$0xf]
    %v124 = vld [vmem:[%s0 + $0x14] sm:$0xf]
    %v125 = vld [vmem:[%s0 + $0x18] sm:$0xf]
    %v126 = vld [vmem:[%s0 + $0x1c] sm:$0xf]
    %v127 = vld [vmem:[%s0 + $0x20] sm:$0xf]
    %v128 = vld [vmem:[%s0 + $0x24] sm:$0xf]
    %v129 = vld [vmem:[%s0 + $0x28] sm:$0xf]
    %v130 = vld [vmem:[%s0 + $0x2c] sm:$0xf]
    %v131 = vld [vmem:[%s0 + $0x30] sm:$0xf]
    %v132 = vld [vmem:[%s0 + $0x34] sm:$0xf]
    %v133 = vld [vmem:[%s0 + $0x38] sm:$0xf]
    %v134 = vld [vmem:[%s0 + $0x3c] sm:$0xf]
    %v135 = vld [vmem:[%s1] sm:$0xf]
    %v136 = vld [vmem:[%s2] sm:$0x1]
    %v138 = vlaneseq
    %v139 = vshrl.u32 %v138, 7
    %v140 = vsub.s32 0, %v139
    %v141 = vrot.slane %v136, %v140
    %v159 = vunpack.c.l.b16 %v119
    %v160 = vunpack.c.l.b16 %v120
    %v161 = vunpack.c.l.b16 %v121
    %v162 = vunpack.c.l.b16 %v122
    %v163 = vunpack.c.l.b16 %v123
    %v164 = vunpack.c.l.b16 %v124
    %v165 = vunpack.c.l.b16 %v125
    %v166 = vunpack.c.l.b16 %v126
    %v167 = vunpack.c.l.b16 %v127
    %v168 = vunpack.c.l.b16 %v128
    %v169 = vunpack.c.l.b16 %v129
    %v170 = vunpack.c.l.b16 %v130
    %v171 = vunpack.c.l.b16 %v131
    %v172 = vunpack.c.l.b16 %v132
    %v173 = vunpack.c.l.b16 %v133
    %v174 = vunpack.c.l.b16 %v134
    %v175 = vpack.c.b16 %v160, %v159
    %v176 = vpack.c.b16 %v162, %v161
    %v177 = vpack.c.b16 %v164, %v163
    %v178 = vpack.c.b16 %v166, %v165
    %v179 = vpack.c.b16 %v168, %v167
    %v180 = vpack.c.b16 %v170, %v169
    %v181 = vpack.c.b16 %v172, %v171
    %v182 = vpack.c.b16 %v174, %v173
    %vm183 = vcmask 64512
    %v185 = vsel %vm183, %v175, 0
    %v188 = vsel %vm183, %v176, 0
    %v191 = vsel %vm183, %v177, 0
    %v194 = vsel %vm183, %v178, 0
    %v197 = vsel %vm183, %v179, 0
    %v200 = vsel %vm183, %v180, 0
    %v203 = vsel %vm183, %v181, 0
    %v206 = vsel %vm183, %v182, 0
    %vm208 = vcmask 1043456
    %v210 = vsel %vm208, %v135, 0
    %212 = vmatprep.subr.bf16.mxu0 0
    %213 = vmatpush1.bf16.msra.mxu0 0
    %214 = vmatprep.subr.bf16.mxu0 0
    %215 = vmatpush1.bf16.msra.mxu0 0
    %216 = vmatprep.subr.bf16.mxu0 0
    %217 = vmatpush1.bf16.msra.mxu0 0
    %218 = vmatprep.subr.bf16.mxu0 0
    %219 = vmatpush1.bf16.msra.mxu0 0
    %220 = vmatprep.subr.bf16.mxu0 0
    %221 = vmatpush1.bf16.msra.mxu0 0
    %222 = vmatprep.subr.bf16.mxu0 0
    %223 = vmatpush1.bf16.msra.mxu0 0
    %224 = vmatprep.subr.bf16.mxu0 0
    %225 = vmatpush1.bf16.msra.mxu0 0
    %226 = vmatprep.subr.bf16.mxu0 0
    %227 = vmatpush1.bf16.msra.mxu0 %v210
    %228 = vmatprep.subr.bf16.mxu0 0
    %229 = vmatpush2.bf16.msra.mxu0 0
    %230 = vmatprep.subr.bf16.mxu0 0
    %231 = vmatpush2.bf16.msra.mxu0 0
    %232 = vmatprep.subr.bf16.mxu0 0
    %233 = vmatpush2.bf16.msra.mxu0 0
    %234 = vmatprep.subr.bf16.mxu0 0
    %235 = vmatpush2.bf16.msra.mxu0 0
    %236 = vmatprep.subr.bf16.mxu0 0
    %237 = vmatpush2.bf16.msra.mxu0 0
    %238 = vmatprep.subr.bf16.mxu0 0
    %239 = vmatpush2.bf16.msra.mxu0 0
    %240 = vmatprep.subr.bf16.mxu0 0
    %241 = vmatpush2.bf16.msra.mxu0 0
    %242 = vmatprep.subr.bf16.mxu0 0
    %243 = vmatpush2.bf16.msra.mxu0 0
    %244 = vmatprep.mubr.bf16.mxu0 0
    %245 = vmatmul.mubr.bf16.gmra.mxu0 %v185
    %v246 = vpop.f32.mrf.mxu0
    %v247 = vadd.f32 %v141, %v246
    %v248 = vpop.f32.mrf.mxu0
    %v249 = vpop.f32.mrf.mxu0
    %v250 = vadd.f32 %v141, %v249
    %v251 = vpop.f32.mrf.mxu0
    %252 = vmatprep.mubr.bf16.mxu0 0
    %253 = vmatmul.mubr.bf16.gmra.mxu0 %v188
    %v254 = vpop.f32.mrf.mxu0
    %v255 = vadd.f32 %v141, %v254
    %v256 = vpop.f32.mrf.mxu0
    %v257 = vpop.f32.mrf.mxu0
    %v258 = vadd.f32 %v141, %v257
    %v259 = vpop.f32.mrf.mxu0
    %260 = vmatprep.mubr.bf16.mxu0 0
    %261 = vmatmul.mubr.bf16.gmra.mxu0 %v191
    %v262 = vpop.f32.mrf.mxu0
    %v263 = vadd.f32 %v141, %v262
    %v264 = vpop.f32.mrf.mxu0
    %v265 = vpop.f32.mrf.mxu0
    %v266 = vadd.f32 %v141, %v265
    %v267 = vpop.f32.mrf.mxu0
    %268 = vmatprep.mubr.bf16.mxu0 0
    %269 = vmatmul.mubr.bf16.gmra.mxu0 %v194
    %v270 = vpop.f32.mrf.mxu0
    %v271 = vadd.f32 %v141, %v270
    %v272 = vpop.f32.mrf.mxu0
    %v273 = vpop.f32.mrf.mxu0
    %v274 = vadd.f32 %v141, %v273
    %v275 = vpop.f32.mrf.mxu0
    %276 = vmatprep.mubr.bf16.mxu0 0
    %277 = vmatmul.mubr.bf16.gmra.mxu0 %v197
    %v278 = vpop.f32.mrf.mxu0
    %v279 = vadd.f32 %v141, %v278
    %v280 = vpop.f32.mrf.mxu0
    %v281 = vpop.f32.mrf.mxu0
    %v282 = vadd.f32 %v141, %v281
    %v283 = vpop.f32.mrf.mxu0
    %284 = vmatprep.mubr.bf16.mxu0 0
    %285 = vmatmul.mubr.bf16.gmra.mxu0 %v200
    %v286 = vpop.f32.mrf.mxu0
    %v287 = vadd.f32 %v141, %v286
    %v288 = vpop.f32.mrf.mxu0
    %v289 = vpop.f32.mrf.mxu0
    %v290 = vadd.f32 %v141, %v289
    %v291 = vpop.f32.mrf.mxu0
    %292 = vmatprep.mubr.bf16.mxu0 0
    %293 = vmatmul.mubr.bf16.gmra.mxu0 %v203
    %v294 = vpop.f32.mrf.mxu0
    %v295 = vadd.f32 %v141, %v294
    %v296 = vpop.f32.mrf.mxu0
    %v297 = vpop.f32.mrf.mxu0
    %v298 = vadd.f32 %v141, %v297
    %v299 = vpop.f32.mrf.mxu0
    %300 = vmatprep.mubr.bf16.mxu0 0
    %301 = vmatmul.mubr.bf16.gmra.mxu0 %v206
    %v302 = vpop.f32.mrf.mxu0
    %v303 = vadd.f32 %v141, %v302
    %v304 = vpop.f32.mrf.mxu0
    %v305 = vpop.f32.mrf.mxu0
    %v306 = vadd.f32 %v141, %v305
    %v307 = vpop.f32.mrf.mxu0
    %308 = vdwg.mxu0
    %v309 = vmax.f32 %v247, 0.0
    %v310 = vmax.f32 %v250, 0.0
    %v311 = vmax.f32 %v255, 0.0
    %v312 = vmax.f32 %v258, 0.0
    %v313 = vmax.f32 %v263, 0.0
    %v314 = vmax.f32 %v266, 0.0
    %v315 = vmax.f32 %v271, 0.0
    %v316 = vmax.f32 %v274, 0.0
    %v317 = vmax.f32 %v279, 0.0
    %v318 = vmax.f32 %v282, 0.0
    %v319 = vmax.f32 %v287, 0.0
    %v320 = vmax.f32 %v290, 0.0
    %v321 = vmax.f32 %v295, 0.0
    %v322 = vmax.f32 %v298, 0.0
    %v323 = vmax.f32 %v303, 0.0
    %v324 = vmax.f32 %v306, 0.0
    %v325 = vpack.c.bf16 %v310, %v309
    %v326 = vpack.c.bf16 %v312, %v311
    %v327 = vpack.c.bf16 %v314, %v313
    %v328 = vpack.c.bf16 %v316, %v315
    %v329 = vpack.c.bf16 %v318, %v317
    %v330 = vpack.c.bf16 %v320, %v319
    %v331 = vpack.c.bf16 %v322, %v321
    %v332 = vpack.c.bf16 %v324, %v323
    %v333 = vld [vmem:[#allocation3] sm:$0xf]
    %v334 = vld [vmem:[#allocation3 + $0x4] sm:$0xf]
    %v335 = vld [vmem:[#allocation3 + $0x8] sm:$0xf]
    %v336 = vld [vmem:[#allocation3 + $0xc] sm:$0xf]
    %v337 = vld [vmem:[#allocation3 + $0x10] sm:$0xf]
    %v338 = vld [vmem:[#allocation3 + $0x14] sm:$0xf]
    %v339 = vld [vmem:[#allocation3 + $0x18] sm:$0xf]
    %v340 = vld [vmem:[#allocation3 + $0x1c] sm:$0xf]
    %v341 = vld [vmem:[#allocation3 + $0x20] sm:$0xf]
    %v342 = vld [vmem:[#allocation3 + $0x24] sm:$0xf]
    %v343 = vld [vmem:[#allocation3 + $0x28] sm:$0xf]
    %v344 = vld [vmem:[#allocation3 + $0x2c] sm:$0xf]
    %v345 = vld [vmem:[#allocation3 + $0x30] sm:$0xf]
    %v346 = vld [vmem:[#allocation3 + $0x34] sm:$0xf]
    %v347 = vld [vmem:[#allocation3 + $0x38] sm:$0xf]
    %v348 = vld [vmem:[#allocation3 + $0x3c] sm:$0xf]
    %v349 = vld [vmem:[%s4] sm:$0x1]
    %v351 = vlaneseq
    %v352 = vshrl.u32 %v351, 7
    %v353 = vsub.s32 0, %v352
    %v354 = vrot.slane %v349, %v353
    %v372 = vunpack.c.l.b16 %v333
    %v373 = vunpack.c.l.b16 %v334
    %v374 = vunpack.c.l.b16 %v335
    %v375 = vunpack.c.l.b16 %v336
    %v376 = vunpack.c.l.b16 %v337
    %v377 = vunpack.c.l.b16 %v338
    %v378 = vunpack.c.l.b16 %v339
    %v379 = vunpack.c.l.b16 %v340
    %v380 = vunpack.c.l.b16 %v341
    %v381 = vunpack.c.l.b16 %v342
    %v382 = vunpack.c.l.b16 %v343
    %v383 = vunpack.c.l.b16 %v344
    %v384 = vunpack.c.l.b16 %v345
    %v385 = vunpack.c.l.b16 %v346
    %v386 = vunpack.c.l.b16 %v347
    %v387 = vunpack.c.l.b16 %v348
    %v388 = vpack.c.b16 %v373, %v372
    %v389 = vpack.c.b16 %v375, %v374
    %v390 = vpack.c.b16 %v377, %v376
    %v391 = vpack.c.b16 %v379, %v378
    %v392 = vpack.c.b16 %v381, %v380
    %v393 = vpack.c.b16 %v383, %v382
    %v394 = vpack.c.b16 %v385, %v384
    %v395 = vpack.c.b16 %v387, %v386
    %404 = vmatprep.subr.bf16.mxu0 0
    %405 = vmatpush1.bf16.msra.mxu0 %v395
    %406 = vmatprep.subr.bf16.mxu0 0
    %407 = vmatpush1.bf16.msra.mxu0 %v394
    %408 = vmatprep.subr.bf16.mxu0 0
    %409 = vmatpush1.bf16.msra.mxu0 %v393
    %410 = vmatprep.subr.bf16.mxu0 0
    %411 = vmatpush1.bf16.msra.mxu0 %v392
    %412 = vmatprep.subr.bf16.mxu0 0
    %413 = vmatpush1.bf16.msra.mxu0 %v391
    %414 = vmatprep.subr.bf16.mxu0 0
    %415 = vmatpush1.bf16.msra.mxu0 %v390
    %416 = vmatprep.subr.bf16.mxu0 0
    %417 = vmatpush1.bf16.msra.mxu0 %v389
    %418 = vmatprep.subr.bf16.mxu0 0
    %419 = vmatpush1.bf16.msra.mxu0 %v388
    %420 = vmatprep.subr.bf16.mxu0 0
    %421 = vmatpush2.bf16.msra.mxu0 0
    %422 = vmatprep.subr.bf16.mxu0 0
    %423 = vmatpush2.bf16.msra.mxu0 0
    %424 = vmatprep.subr.bf16.mxu0 0
    %425 = vmatpush2.bf16.msra.mxu0 0
    %426 = vmatprep.subr.bf16.mxu0 0
    %427 = vmatpush2.bf16.msra.mxu0 0
    %428 = vmatprep.subr.bf16.mxu0 0
    %429 = vmatpush2.bf16.msra.mxu0 0
    %430 = vmatprep.subr.bf16.mxu0 0
    %431 = vmatpush2.bf16.msra.mxu0 0
    %432 = vmatprep.subr.bf16.mxu0 0
    %433 = vmatpush2.bf16.msra.mxu0 0
    %434 = vmatprep.subr.bf16.mxu0 0
    %435 = vmatpush2.bf16.msra.mxu0 0
    %436 = vmatprep.mubr.bf16.mxu0 0
    %437 = vmatmul.mubr.bf16.gmra.mxu0 %v325
    %v438 = vpop.f32.mrf.mxu0
    %v439 = vadd.f32 %v354, %v438
    %v440 = vpop.f32.mrf.mxu0
    %v441 = vpop.f32.mrf.mxu0
    %v442 = vadd.f32 %v354, %v441
    %v443 = vpop.f32.mrf.mxu0
    %444 = vmatprep.mubr.bf16.mxu0 0
    %445 = vmatmul.mubr.bf16.gmra.mxu0 %v326
    %v446 = vpop.f32.mrf.mxu0
    %v447 = vadd.f32 %v354, %v446
    %v448 = vpop.f32.mrf.mxu0
    %v449 = vpop.f32.mrf.mxu0
    %v450 = vadd.f32 %v354, %v449
    %v451 = vpop.f32.mrf.mxu0
    %452 = vmatprep.mubr.bf16.mxu0 0
    %453 = vmatmul.mubr.bf16.gmra.mxu0 %v327
    %v454 = vpop.f32.mrf.mxu0
    %v455 = vadd.f32 %v354, %v454
    %v456 = vpop.f32.mrf.mxu0
    %v457 = vpop.f32.mrf.mxu0
    %v458 = vadd.f32 %v354, %v457
    %v459 = vpop.f32.mrf.mxu0
    %460 = vmatprep.mubr.bf16.mxu0 0
    %461 = vmatmul.mubr.bf16.gmra.mxu0 %v328
    %v462 = vpop.f32.mrf.mxu0
    %v463 = vadd.f32 %v354, %v462
    %v464 = vpop.f32.mrf.mxu0
    %v465 = vpop.f32.mrf.mxu0
    %v466 = vadd.f32 %v354, %v465
    %v467 = vpop.f32.mrf.mxu0
    %468 = vmatprep.mubr.bf16.mxu0 0
    %469 = vmatmul.mubr.bf16.gmra.mxu0 %v329
    %v470 = vpop.f32.mrf.mxu0
    %v471 = vadd.f32 %v354, %v470
    %v472 = vpop.f32.mrf.mxu0
    %v473 = vpop.f32.mrf.mxu0
    %v474 = vadd.f32 %v354, %v473
    %v475 = vpop.f32.mrf.mxu0
    %476 = vmatprep.mubr.bf16.mxu0 0
    %477 = vmatmul.mubr.bf16.gmra.mxu0 %v330
    %v478 = vpop.f32.mrf.mxu0
    %v479 = vadd.f32 %v354, %v478
    %v480 = vpop.f32.mrf.mxu0
    %v481 = vpop.f32.mrf.mxu0
    %v482 = vadd.f32 %v354, %v481
    %v483 = vpop.f32.mrf.mxu0
    %484 = vmatprep.mubr.bf16.mxu0 0
    %485 = vmatmul.mubr.bf16.gmra.mxu0 %v331
    %v486 = vpop.f32.mrf.mxu0
    %v487 = vadd.f32 %v354, %v486
    %v488 = vpop.f32.mrf.mxu0
    %v489 = vpop.f32.mrf.mxu0
    %v490 = vadd.f32 %v354, %v489
    %v491 = vpop.f32.mrf.mxu0
    %492 = vmatprep.mubr.bf16.mxu0 0
    %493 = vmatmul.mubr.bf16.gmra.mxu0 %v332
    %v494 = vpop.f32.mrf.mxu0
    %v495 = vadd.f32 %v354, %v494
    %v496 = vpop.f32.mrf.mxu0
    %v497 = vpop.f32.mrf.mxu0
    %v498 = vadd.f32 %v354, %v497
    %v499 = vpop.f32.mrf.mxu0
    %500 = vdwg.mxu0
    %v501 = vmax.f32 %v439, 0.0
    %v502 = vmax.f32 %v442, 0.0
    %v503 = vmax.f32 %v447, 0.0
    %v504 = vmax.f32 %v450, 0.0
    %v505 = vmax.f32 %v455, 0.0
    %v506 = vmax.f32 %v458, 0.0
    %v507 = vmax.f32 %v463, 0.0
    %v508 = vmax.f32 %v466, 0.0
    %v509 = vmax.f32 %v471, 0.0
    %v510 = vmax.f32 %v474, 0.0
    %v511 = vmax.f32 %v479, 0.0
    %v512 = vmax.f32 %v482, 0.0
    %v513 = vmax.f32 %v487, 0.0
    %v514 = vmax.f32 %v490, 0.0
    %v515 = vmax.f32 %v495, 0.0
    %v516 = vmax.f32 %v498, 0.0
    %v517 = vpack.c.bf16 %v502, %v501
    %v518 = vpack.c.bf16 %v504, %v503
    %v519 = vpack.c.bf16 %v506, %v505
    %v520 = vpack.c.bf16 %v508, %v507
    %v521 = vpack.c.bf16 %v510, %v509
    %v522 = vpack.c.bf16 %v512, %v511
    %v523 = vpack.c.bf16 %v514, %v513
    %v524 = vpack.c.bf16 %v516, %v515
    %v525 = vld [vmem:[#allocation5] sm:$0xf]
    %v526 = vld [vmem:[#allocation5 + $0x4] sm:$0xf]
    %v527 = vld [vmem:[#allocation5 + $0x8] sm:$0xf]
    %v528 = vld [vmem:[#allocation5 + $0xc] sm:$0xf]
    %v529 = vld [vmem:[#allocation5 + $0x10] sm:$0xf]
    %v530 = vld [vmem:[#allocation5 + $0x14] sm:$0xf]
    %v531 = vld [vmem:[#allocation5 + $0x18] sm:$0xf]
    %v532 = vld [vmem:[#allocation5 + $0x1c] sm:$0xf]
    %v533 = vld [vmem:[#allocation5 + $0x20] sm:$0xf]
    %v534 = vld [vmem:[#allocation5 + $0x24] sm:$0xf]
    %v535 = vld [vmem:[#allocation5 + $0x28] sm:$0xf]
    %v536 = vld [vmem:[#allocation5 + $0x2c] sm:$0xf]
    %v537 = vld [vmem:[#allocation5 + $0x30] sm:$0xf]
    %v538 = vld [vmem:[#allocation5 + $0x34] sm:$0xf]
    %v539 = vld [vmem:[#allocation5 + $0x38] sm:$0xf]
    %v540 = vld [vmem:[#allocation5 + $0x3c] sm:$0xf]
    %v541 = vld [vmem:[#allocation7] sm:$0x1]
    %v543 = vlaneseq
    %v544 = vshrl.u32 %v543, 7
    %v545 = vsub.s32 0, %v544
    %v546 = vrot.slane %v541, %v545
    %v564 = vunpack.c.l.b16 %v525
    %v565 = vunpack.c.l.b16 %v526
    %v566 = vunpack.c.l.b16 %v527
    %v567 = vunpack.c.l.b16 %v528
    %v568 = vunpack.c.l.b16 %v529
    %v569 = vunpack.c.l.b16 %v530
    %v570 = vunpack.c.l.b16 %v531
    %v571 = vunpack.c.l.b16 %v532
    %v572 = vunpack.c.l.b16 %v533
    %v573 = vunpack.c.l.b16 %v534
    %v574 = vunpack.c.l.b16 %v535
    %v575 = vunpack.c.l.b16 %v536
    %v576 = vunpack.c.l.b16 %v537
    %v577 = vunpack.c.l.b16 %v538
    %v578 = vunpack.c.l.b16 %v539
    %v579 = vunpack.c.l.b16 %v540
    %v580 = vpack.c.b16 %v565, %v564
    %v581 = vpack.c.b16 %v567, %v566
    %v582 = vpack.c.b16 %v569, %v568
    %v583 = vpack.c.b16 %v571, %v570
    %v584 = vpack.c.b16 %v573, %v572
    %v585 = vpack.c.b16 %v575, %v574
    %v586 = vpack.c.b16 %v577, %v576
    %v587 = vpack.c.b16 %v579, %v578
    %596 = vmatprep.subr.bf16.mxu0 0
    %597 = vmatpush1.bf16.msra.mxu0 %v587
    %598 = vmatprep.subr.bf16.mxu0 0
    %599 = vmatpush1.bf16.msra.mxu0 %v586
    %600 = vmatprep.subr.bf16.mxu0 0
    %601 = vmatpush1.bf16.msra.mxu0 %v585
    %602 = vmatprep.subr.bf16.mxu0 0
    %603 = vmatpush1.bf16.msra.mxu0 %v584
    %604 = vmatprep.subr.bf16.mxu0 0
    %605 = vmatpush1.bf16.msra.mxu0 %v583
    %606 = vmatprep.subr.bf16.mxu0 0
    %607 = vmatpush1.bf16.msra.mxu0 %v582
    %608 = vmatprep.subr.bf16.mxu0 0
    %609 = vmatpush1.bf16.msra.mxu0 %v581
    %610 = vmatprep.subr.bf16.mxu0 0
    %611 = vmatpush1.bf16.msra.mxu0 %v580
    %612 = vmatprep.subr.bf16.mxu0 0
    %613 = vmatpush2.bf16.msra.mxu0 0
    %614 = vmatprep.subr.bf16.mxu0 0
    %615 = vmatpush2.bf16.msra.mxu0 0
    %616 = vmatprep.subr.bf16.mxu0 0
    %617 = vmatpush2.bf16.msra.mxu0 0
    %618 = vmatprep.subr.bf16.mxu0 0
    %619 = vmatpush2.bf16.msra.mxu0 0
    %620 = vmatprep.subr.bf16.mxu0 0
    %621 = vmatpush2.bf16.msra.mxu0 0
    %622 = vmatprep.subr.bf16.mxu0 0
    %623 = vmatpush2.bf16.msra.mxu0 0
    %624 = vmatprep.subr.bf16.mxu0 0
    %625 = vmatpush2.bf16.msra.mxu0 0
    %626 = vmatprep.subr.bf16.mxu0 0
    %627 = vmatpush2.bf16.msra.mxu0 0
    %628 = vmatprep.mubr.bf16.mxu0 0
    %629 = vmatmul.mubr.bf16.gmra.mxu0 %v517
    %v630 = vpop.f32.mrf.mxu0
    %v631 = vadd.f32 %v546, %v630
    %v632 = vpop.f32.mrf.mxu0
    %v633 = vpop.f32.mrf.mxu0
    %v634 = vadd.f32 %v546, %v633
    %v635 = vpop.f32.mrf.mxu0
    %636 = vmatprep.mubr.bf16.mxu0 0
    %637 = vmatmul.mubr.bf16.gmra.mxu0 %v518
    %v638 = vpop.f32.mrf.mxu0
    %v639 = vadd.f32 %v546, %v638
    %v640 = vpop.f32.mrf.mxu0
    %v641 = vpop.f32.mrf.mxu0
    %v642 = vadd.f32 %v546, %v641
    %v643 = vpop.f32.mrf.mxu0
    %644 = vmatprep.mubr.bf16.mxu0 0
    %645 = vmatmul.mubr.bf16.gmra.mxu0 %v519
    %v646 = vpop.f32.mrf.mxu0
    %v647 = vadd.f32 %v546, %v646
    %v648 = vpop.f32.mrf.mxu0
    %v649 = vpop.f32.mrf.mxu0
    %v650 = vadd.f32 %v546, %v649
    %v651 = vpop.f32.mrf.mxu0
    %652 = vmatprep.mubr.bf16.mxu0 0
    %653 = vmatmul.mubr.bf16.gmra.mxu0 %v520
    %v654 = vpop.f32.mrf.mxu0
    %v655 = vadd.f32 %v546, %v654
    %v656 = vpop.f32.mrf.mxu0
    %v657 = vpop.f32.mrf.mxu0
    %v658 = vadd.f32 %v546, %v657
    %v659 = vpop.f32.mrf.mxu0
    %660 = vmatprep.mubr.bf16.mxu0 0
    %661 = vmatmul.mubr.bf16.gmra.mxu0 %v521
    %v662 = vpop.f32.mrf.mxu0
    %v663 = vadd.f32 %v546, %v662
    %v664 = vpop.f32.mrf.mxu0
    %v665 = vpop.f32.mrf.mxu0
    %v666 = vadd.f32 %v546, %v665
    %v667 = vpop.f32.mrf.mxu0
    %668 = vmatprep.mubr.bf16.mxu0 0
    %669 = vmatmul.mubr.bf16.gmra.mxu0 %v522
    %v670 = vpop.f32.mrf.mxu0
    %v671 = vadd.f32 %v546, %v670
    %v672 = vpop.f32.mrf.mxu0
    %v673 = vpop.f32.mrf.mxu0
    %v674 = vadd.f32 %v546, %v673
    %v675 = vpop.f32.mrf.mxu0
    %676 = vmatprep.mubr.bf16.mxu0 0
    %677 = vmatmul.mubr.bf16.gmra.mxu0 %v523
    %v678 = vpop.f32.mrf.mxu0
    %v679 = vadd.f32 %v546, %v678
    %v680 = vpop.f32.mrf.mxu0
    %v681 = vpop.f32.mrf.mxu0
    %v682 = vadd.f32 %v546, %v681
    %v683 = vpop.f32.mrf.mxu0
    %684 = vmatprep.mubr.bf16.mxu0 0
    %685 = vmatmul.mubr.bf16.gmra.mxu0 %v524
    %v686 = vpop.f32.mrf.mxu0
    %v687 = vadd.f32 %v546, %v686
    %v688 = vpop.f32.mrf.mxu0
    %v689 = vpop.f32.mrf.mxu0
    %v690 = vadd.f32 %v546, %v689
    %v691 = vpop.f32.mrf.mxu0
    %692 = vdwg.mxu0
    %v693 = vmax.f32 %v631, 0.0
    %v694 = vmax.f32 %v634, 0.0
    %v695 = vmax.f32 %v639, 0.0
    %v696 = vmax.f32 %v642, 0.0
    %v697 = vmax.f32 %v647, 0.0
    %v698 = vmax.f32 %v650, 0.0
    %v699 = vmax.f32 %v655, 0.0
    %v700 = vmax.f32 %v658, 0.0
    %v701 = vmax.f32 %v663, 0.0
    %v702 = vmax.f32 %v666, 0.0
    %v703 = vmax.f32 %v671, 0.0
    %v704 = vmax.f32 %v674, 0.0
    %v705 = vmax.f32 %v679, 0.0
    %v706 = vmax.f32 %v682, 0.0
    %v707 = vmax.f32 %v687, 0.0
    %v708 = vmax.f32 %v690, 0.0
    %v709 = vpack.c.bf16 %v694, %v693
    %v710 = vpack.c.bf16 %v696, %v695
    %v711 = vpack.c.bf16 %v698, %v697
    %v712 = vpack.c.bf16 %v700, %v699
    %v713 = vpack.c.bf16 %v702, %v701
    %v714 = vpack.c.bf16 %v704, %v703
    %v715 = vpack.c.bf16 %v706, %v705
    %v716 = vpack.c.bf16 %v708, %v707
    %v717 = vld [vmem:[%s7] sm:$0xff]
    %v718 = vld [vmem:[%s7 + $0x8] sm:$0xff]
    %v719 = vld [vmem:[%s7 + $0x10] sm:$0xff]
    %v720 = vld [vmem:[%s7 + $0x18] sm:$0xff]
    %v721 = vld [vmem:[%s7 + $0x20] sm:$0xff]
    %v722 = vld [vmem:[%s7 + $0x28] sm:$0xff]
    %v723 = vld [vmem:[%s7 + $0x30] sm:$0xff]
    %v724 = vld [vmem:[%s7 + $0x38] sm:$0xff]
    %v725 = vld [vmem:[%s7 + $0x40] sm:$0xff]
    %v726 = vld [vmem:[%s7 + $0x48] sm:$0xff]
    %v727 = vld [vmem:[%s7 + $0x50] sm:$0xff]
    %v728 = vld [vmem:[%s7 + $0x58] sm:$0xff]
    %v729 = vld [vmem:[%s7 + $0x60] sm:$0xff]
    %v730 = vld [vmem:[%s7 + $0x68] sm:$0xff]
    %v731 = vld [vmem:[%s7 + $0x70] sm:$0xff]
    %v732 = vld [vmem:[%s7 + $0x78] sm:$0xff]
    %v733 = vld [vmem:[%s8] sm:$0x3]
    %v735 = vlaneseq
    %v736 = vshrl.u32 %v735, 7
    %v737 = vsub.s32 0, %v736
    %v738 = vrot.slane %v733, %v737
    %v739 = vlaneseq
    %v740 = vshrl.u32 %v739, 7
    %v741 = vsub.s32 1, %v740
    %v742 = vrot.slane %v733, %v741
    %v761 = vunpack.c.l.b16 %v717
    %v762 = vunpack.c.h.b16 %v717
    %v763 = vunpack.c.l.b16 %v718
    %v764 = vunpack.c.h.b16 %v718
    %v765 = vunpack.c.l.b16 %v719
    %v766 = vunpack.c.h.b16 %v719
    %v767 = vunpack.c.l.b16 %v720
    %v768 = vunpack.c.h.b16 %v720
    %v769 = vunpack.c.l.b16 %v721
    %v770 = vunpack.c.h.b16 %v721
    %v771 = vunpack.c.l.b16 %v722
    %v772 = vunpack.c.h.b16 %v722
    %v773 = vunpack.c.l.b16 %v723
    %v774 = vunpack.c.h.b16 %v723
    %v775 = vunpack.c.l.b16 %v724
    %v776 = vunpack.c.h.b16 %v724
    %v777 = vunpack.c.l.b16 %v725
    %v778 = vunpack.c.h.b16 %v725
    %v779 = vunpack.c.l.b16 %v726
    %v780 = vunpack.c.h.b16 %v726
    %v781 = vunpack.c.l.b16 %v727
    %v782 = vunpack.c.h.b16 %v727
    %v783 = vunpack.c.l.b16 %v728
    %v784 = vunpack.c.h.b16 %v728
    %v785 = vunpack.c.l.b16 %v729
    %v786 = vunpack.c.h.b16 %v729
    %v787 = vunpack.c.l.b16 %v730
    %v788 = vunpack.c.h.b16 %v730
    %v789 = vunpack.c.l.b16 %v731
    %v790 = vunpack.c.h.b16 %v731
    %v791 = vunpack.c.l.b16 %v732
    %v792 = vunpack.c.h.b16 %v732
    %v793 = vpack.c.b16 %v763, %v761
    %v794 = vpack.c.b16 %v764, %v762
    %v795 = vpack.c.b16 %v767, %v765
    %v796 = vpack.c.b16 %v768, %v766
    %v797 = vpack.c.b16 %v771, %v769
    %v798 = vpack.c.b16 %v772, %v770
    %v799 = vpack.c.b16 %v775, %v773
    %v800 = vpack.c.b16 %v776, %v774
    %v801 = vpack.c.b16 %v779, %v777
    %v802 = vpack.c.b16 %v780, %v778
    %v803 = vpack.c.b16 %v783, %v781
    %v804 = vpack.c.b16 %v784, %v782
    %v805 = vpack.c.b16 %v787, %v785
    %v806 = vpack.c.b16 %v788, %v786
    %v807 = vpack.c.b16 %v791, %v789
    %v808 = vpack.c.b16 %v792, %v790
    %825 = vmatprep.subr.bf16.mxu0 %v808
    %826 = vmatpush1.bf16.msra.mxu0 %v807
    %827 = vmatprep.subr.bf16.mxu0 %v806
    %828 = vmatpush1.bf16.msra.mxu0 %v805
    %829 = vmatprep.subr.bf16.mxu0 %v804
    %830 = vmatpush1.bf16.msra.mxu0 %v803
    %831 = vmatprep.subr.bf16.mxu0 %v802
    %832 = vmatpush1.bf16.msra.mxu0 %v801
    %833 = vmatprep.subr.bf16.mxu0 %v800
    %834 = vmatpush1.bf16.msra.mxu0 %v799
    %835 = vmatprep.subr.bf16.mxu0 %v798
    %836 = vmatpush1.bf16.msra.mxu0 %v797
    %837 = vmatprep.subr.bf16.mxu0 %v796
    %838 = vmatpush1.bf16.msra.mxu0 %v795
    %839 = vmatprep.subr.bf16.mxu0 %v794
    %840 = vmatpush1.bf16.msra.mxu0 %v793
    %841 = vmatprep.subr.bf16.mxu0 0
    %842 = vmatpush2.bf16.msra.mxu0 0
    %843 = vmatprep.subr.bf16.mxu0 0
    %844 = vmatpush2.bf16.msra.mxu0 0
    %845 = vmatprep.subr.bf16.mxu0 0
    %846 = vmatpush2.bf16.msra.mxu0 0
    %847 = vmatprep.subr.bf16.mxu0 0
    %848 = vmatpush2.bf16.msra.mxu0 0
    %849 = vmatprep.subr.bf16.mxu0 0
    %850 = vmatpush2.bf16.msra.mxu0 0
    %851 = vmatprep.subr.bf16.mxu0 0
    %852 = vmatpush2.bf16.msra.mxu0 0
    %853 = vmatprep.subr.bf16.mxu0 0
    %854 = vmatpush2.bf16.msra.mxu0 0
    %855 = vmatprep.subr.bf16.mxu0 0
    %856 = vmatpush2.bf16.msra.mxu0 0
    %857 = vmatprep.mubr.bf16.mxu0 0
    %858 = vmatmul.mubr.bf16.gmra.mxu0 %v709
    %v859 = vpop.f32.mrf.mxu0
    %v860 = vadd.f32 %v738, %v859
    %v861 = vpop.f32.mrf.mxu0
    %v862 = vadd.f32 %v742, %v861
    %v863 = vpop.f32.mrf.mxu0
    %v864 = vadd.f32 %v738, %v863
    %v865 = vpop.f32.mrf.mxu0
    %v866 = vadd.f32 %v742, %v865
    %867 = vmatprep.mubr.bf16.mxu0 0
    %868 = vmatmul.mubr.bf16.gmra.mxu0 %v710
    %v869 = vpop.f32.mrf.mxu0
    %v870 = vadd.f32 %v738, %v869
    %v871 = vpop.f32.mrf.mxu0
    %v872 = vadd.f32 %v742, %v871
    %v873 = vpop.f32.mrf.mxu0
    %v874 = vadd.f32 %v738, %v873
    %v875 = vpop.f32.mrf.mxu0
    %v876 = vadd.f32 %v742, %v875
    %877 = vmatprep.mubr.bf16.mxu0 0
    %878 = vmatmul.mubr.bf16.gmra.mxu0 %v711
    %v879 = vpop.f32.mrf.mxu0
    %v880 = vadd.f32 %v738, %v879
    %v881 = vpop.f32.mrf.mxu0
    %v882 = vadd.f32 %v742, %v881
    %v883 = vpop.f32.mrf.mxu0
    %v884 = vadd.f32 %v738, %v883
    %v885 = vpop.f32.mrf.mxu0
    %v886 = vadd.f32 %v742, %v885
    %887 = vmatprep.mubr.bf16.mxu0 0
    %888 = vmatmul.mubr.bf16.gmra.mxu0 %v712
    %v889 = vpop.f32.mrf.mxu0
    %v890 = vadd.f32 %v738, %v889
    %v891 = vpop.f32.mrf.mxu0
    %v892 = vadd.f32 %v742, %v891
    %v893 = vpop.f32.mrf.mxu0
    %v894 = vadd.f32 %v738, %v893
    %v895 = vpop.f32.mrf.mxu0
    %v896 = vadd.f32 %v742, %v895
    %897 = vmatprep.mubr.bf16.mxu0 0
    %898 = vmatmul.mubr.bf16.gmra.mxu0 %v713
    %v899 = vpop.f32.mrf.mxu0
    %v900 = vadd.f32 %v738, %v899
    %v901 = vpop.f32.mrf.mxu0
    %v902 = vadd.f32 %v742, %v901
    %v903 = vpop.f32.mrf.mxu0
    %v904 = vadd.f32 %v738, %v903
    %v905 = vpop.f32.mrf.mxu0
    %v906 = vadd.f32 %v742, %v905
    %907 = vmatprep.mubr.bf16.mxu0 0
    %908 = vmatmul.mubr.bf16.gmra.mxu0 %v714
    %v909 = vpop.f32.mrf.mxu0
    %v910 = vadd.f32 %v738, %v909
    %v911 = vpop.f32.mrf.mxu0
    %v912 = vadd.f32 %v742, %v911
    %v913 = vpop.f32.mrf.mxu0
    %v914 = vadd.f32 %v738, %v913
    %v915 = vpop.f32.mrf.mxu0
    %v916 = vadd.f32 %v742, %v915
    %917 = vmatprep.mubr.bf16.mxu0 0
    %918 = vmatmul.mubr.bf16.gmra.mxu0 %v715
    %v919 = vpop.f32.mrf.mxu0
    %v920 = vadd.f32 %v738, %v919
    %v921 = vpop.f32.mrf.mxu0
    %v922 = vadd.f32 %v742, %v921
    %v923 = vpop.f32.mrf.mxu0
    %v924 = vadd.f32 %v738, %v923
    %v925 = vpop.f32.mrf.mxu0
    %v926 = vadd.f32 %v742, %v925
    %927 = vmatprep.mubr.bf16.mxu0 0
    %928 = vmatmul.mubr.bf16.gmra.mxu0 %v716
    %v929 = vpop.f32.mrf.mxu0
    %v930 = vadd.f32 %v738, %v929
    %v931 = vpop.f32.mrf.mxu0
    %v932 = vadd.f32 %v742, %v931
    %v933 = vpop.f32.mrf.mxu0
    %v934 = vadd.f32 %v738, %v933
    %v935 = vpop.f32.mrf.mxu0
    %v936 = vadd.f32 %v742, %v935
    %937 = vdwg.mxu0
    %v938 = vmax.f32 %v860, 0.0
    %v939 = vmax.f32 %v862, 0.0
    %v940 = vmax.f32 %v864, 0.0
    %v941 = vmax.f32 %v866, 0.0
    %v942 = vmax.f32 %v870, 0.0
    %v943 = vmax.f32 %v872, 0.0
    %v944 = vmax.f32 %v874, 0.0
    %v945 = vmax.f32 %v876, 0.0
    %v946 = vmax.f32 %v880, 0.0
    %v947 = vmax.f32 %v882, 0.0
    %v948 = vmax.f32 %v884, 0.0
    %v949 = vmax.f32 %v886, 0.0
    %v950 = vmax.f32 %v890, 0.0
    %v951 = vmax.f32 %v892, 0.0
    %v952 = vmax.f32 %v894, 0.0
    %v953 = vmax.f32 %v896, 0.0
    %v954 = vmax.f32 %v900, 0.0
    %v955 = vmax.f32 %v902, 0.0
    %v956 = vmax.f32 %v904, 0.0
    %v957 = vmax.f32 %v906, 0.0
    %v958 = vmax.f32 %v910, 0.0
    %v959 = vmax.f32 %v912, 0.0
    %v960 = vmax.f32 %v914, 0.0
    %v961 = vmax.f32 %v916, 0.0
    %v962 = vmax.f32 %v920, 0.0
    %v963 = vmax.f32 %v922, 0.0
    %v964 = vmax.f32 %v924, 0.0
    %v965 = vmax.f32 %v926, 0.0
    %v966 = vmax.f32 %v930, 0.0
    %v967 = vmax.f32 %v932, 0.0
    %v968 = vmax.f32 %v934, 0.0
    %v969 = vmax.f32 %v936, 0.0
    %v970 = vpack.c.bf16 %v940, %v938
    %v971 = vpack.c.bf16 %v941, %v939
    %v972 = vpack.c.bf16 %v944, %v942
    %v973 = vpack.c.bf16 %v945, %v943
    %v974 = vpack.c.bf16 %v948, %v946
    %v975 = vpack.c.bf16 %v949, %v947
    %v976 = vpack.c.bf16 %v952, %v950
    %v977 = vpack.c.bf16 %v953, %v951
    %v978 = vpack.c.bf16 %v956, %v954
    %v979 = vpack.c.bf16 %v957, %v955
    %v980 = vpack.c.bf16 %v960, %v958
    %v981 = vpack.c.bf16 %v961, %v959
    %v982 = vpack.c.bf16 %v964, %v962
    %v983 = vpack.c.bf16 %v965, %v963
    %v984 = vpack.c.bf16 %v968, %v966
    %v985 = vpack.c.bf16 %v969, %v967
    %v986 = vld [vmem:[#allocation8] sm:$0xf]
    %v987 = vld [vmem:[#allocation8 + $0x4] sm:$0xf]
    %v988 = vld [vmem:[#allocation8 + $0x8] sm:$0xf]
    %v989 = vld [vmem:[#allocation8 + $0xc] sm:$0xf]
    %v990 = vld [vmem:[#allocation8 + $0x10] sm:$0xf]
    %v991 = vld [vmem:[#allocation8 + $0x14] sm:$0xf]
    %v992 = vld [vmem:[#allocation8 + $0x18] sm:$0xf]
    %v993 = vld [vmem:[#allocation8 + $0x1c] sm:$0xf]
    %v994 = vld [vmem:[#allocation8 + $0x20] sm:$0xf]
    %v995 = vld [vmem:[#allocation8 + $0x24] sm:$0xf]
    %v996 = vld [vmem:[#allocation8 + $0x28] sm:$0xf]
    %v997 = vld [vmem:[#allocation8 + $0x2c] sm:$0xf]
    %v998 = vld [vmem:[#allocation8 + $0x30] sm:$0xf]
    %v999 = vld [vmem:[#allocation8 + $0x34] sm:$0xf]
    %v1000 = vld [vmem:[#allocation8 + $0x38] sm:$0xf]
    %v1001 = vld [vmem:[#allocation8 + $0x3c] sm:$0xf]
    %v1002 = vld [vmem:[#allocation8 + $0x40] sm:$0xf]
    %v1003 = vld [vmem:[#allocation8 + $0x44] sm:$0xf]
    %v1004 = vld [vmem:[#allocation8 + $0x48] sm:$0xf]
    %v1005 = vld [vmem:[#allocation8 + $0x4c] sm:$0xf]
    %v1006 = vld [vmem:[#allocation8 + $0x50] sm:$0xf]
    %v1007 = vld [vmem:[#allocation8 + $0x54] sm:$0xf]
    %v1008 = vld [vmem:[#allocation8 + $0x58] sm:$0xf]
    %v1009 = vld [vmem:[#allocation8 + $0x5c] sm:$0xf]
    %v1010 = vld [vmem:[#allocation8 + $0x60] sm:$0xf]
    %v1011 = vld [vmem:[#allocation8 + $0x64] sm:$0xf]
    %v1012 = vld [vmem:[#allocation8 + $0x68] sm:$0xf]
    %v1013 = vld [vmem:[#allocation8 + $0x6c] sm:$0xf]
    %v1014 = vld [vmem:[#allocation8 + $0x70] sm:$0xf]
    %v1015 = vld [vmem:[#allocation8 + $0x74] sm:$0xf]
    %v1016 = vld [vmem:[#allocation8 + $0x78] sm:$0xf]
    %v1017 = vld [vmem:[#allocation8 + $0x7c] sm:$0xf]
    %v1018 = vld [vmem:[%s10] sm:$0x1]
    %v1020 = vlaneseq
    %v1021 = vshrl.u32 %v1020, 7
    %v1022 = vsub.s32 0, %v1021
    %v1023 = vrot.slane %v1018, %v1022
    %v1057 = vunpack.c.l.b16 %v986
    %v1058 = vunpack.c.l.b16 %v987
    %v1059 = vunpack.c.l.b16 %v988
    %v1060 = vunpack.c.l.b16 %v989
    %v1061 = vunpack.c.l.b16 %v990
    %v1062 = vunpack.c.l.b16 %v991
    %v1063 = vunpack.c.l.b16 %v992
    %v1064 = vunpack.c.l.b16 %v993
    %v1065 = vunpack.c.l.b16 %v994
    %v1066 = vunpack.c.l.b16 %v995
    %v1067 = vunpack.c.l.b16 %v996
    %v1068 = vunpack.c.l.b16 %v997
    %v1069 = vunpack.c.l.b16 %v998
    %v1070 = vunpack.c.l.b16 %v999
    %v1071 = vunpack.c.l.b16 %v1000
    %v1072 = vunpack.c.l.b16 %v1001
    %v1073 = vunpack.c.l.b16 %v1002
    %v1074 = vunpack.c.l.b16 %v1003
    %v1075 = vunpack.c.l.b16 %v1004
    %v1076 = vunpack.c.l.b16 %v1005
    %v1077 = vunpack.c.l.b16 %v1006
    %v1078 = vunpack.c.l.b16 %v1007
    %v1079 = vunpack.c.l.b16 %v1008
    %v1080 = vunpack.c.l.b16 %v1009
    %v1081 = vunpack.c.l.b16 %v1010
    %v1082 = vunpack.c.l.b16 %v1011
    %v1083 = vunpack.c.l.b16 %v1012
    %v1084 = vunpack.c.l.b16 %v1013
    %v1085 = vunpack.c.l.b16 %v1014
    %v1086 = vunpack.c.l.b16 %v1015
    %v1087 = vunpack.c.l.b16 %v1016
    %v1088 = vunpack.c.l.b16 %v1017
    %v1089 = vpack.c.b16 %v1058, %v1057
    %v1090 = vpack.c.b16 %v1060, %v1059
    %v1091 = vpack.c.b16 %v1062, %v1061
    %v1092 = vpack.c.b16 %v1064, %v1063
    %v1093 = vpack.c.b16 %v1066, %v1065
    %v1094 = vpack.c.b16 %v1068, %v1067
    %v1095 = vpack.c.b16 %v1070, %v1069
    %v1096 = vpack.c.b16 %v1072, %v1071
    %v1097 = vpack.c.b16 %v1074, %v1073
    %v1098 = vpack.c.b16 %v1076, %v1075
    %v1099 = vpack.c.b16 %v1078, %v1077
    %v1100 = vpack.c.b16 %v1080, %v1079
    %v1101 = vpack.c.b16 %v1082, %v1081
    %v1102 = vpack.c.b16 %v1084, %v1083
    %v1103 = vpack.c.b16 %v1086, %v1085
    %v1104 = vpack.c.b16 %v1088, %v1087
    %1121 = vmatprep.subr.bf16.mxu0 0
    %1122 = vmatpush1.bf16.msra.mxu0 %v1096
    %1123 = vmatprep.subr.bf16.mxu0 0
    %1124 = vmatpush1.bf16.msra.mxu0 %v1095
    %1125 = vmatprep.subr.bf16.mxu0 0
    %1126 = vmatpush1.bf16.msra.mxu0 %v1094
    %1127 = vmatprep.subr.bf16.mxu0 0
    %1128 = vmatpush1.bf16.msra.mxu0 %v1093
    %1129 = vmatprep.subr.bf16.mxu0 0
    %1130 = vmatpush1.bf16.msra.mxu0 %v1092
    %1131 = vmatprep.subr.bf16.mxu0 0
    %1132 = vmatpush1.bf16.msra.mxu0 %v1091
    %1133 = vmatprep.subr.bf16.mxu0 0
    %1134 = vmatpush1.bf16.msra.mxu0 %v1090
    %1135 = vmatprep.subr.bf16.mxu0 0
    %1136 = vmatpush1.bf16.msra.mxu0 %v1089
    %1137 = vmatprep.subr.bf16.mxu0 0
    %1138 = vmatpush2.bf16.msra.mxu0 %v1104
    %1139 = vmatprep.subr.bf16.mxu0 0
    %1140 = vmatpush2.bf16.msra.mxu0 %v1103
    %1141 = vmatprep.subr.bf16.mxu0 0
    %1142 = vmatpush2.bf16.msra.mxu0 %v1102
    %1143 = vmatprep.subr.bf16.mxu0 0
    %1144 = vmatpush2.bf16.msra.mxu0 %v1101
    %1145 = vmatprep.subr.bf16.mxu0 0
    %1146 = vmatpush2.bf16.msra.mxu0 %v1100
    %1147 = vmatprep.subr.bf16.mxu0 0
    %1148 = vmatpush2.bf16.msra.mxu0 %v1099
    %1149 = vmatprep.subr.bf16.mxu0 0
    %1150 = vmatpush2.bf16.msra.mxu0 %v1098
    %1151 = vmatprep.subr.bf16.mxu0 0
    %1152 = vmatpush2.bf16.msra.mxu0 %v1097
    %1153 = vmatprep.mubr.bf16.mxu0 %v971
    %1154 = vmatmul.mubr.bf16.gmra.mxu0 %v970
    %v1155 = vpop.f32.mrf.mxu0
    %v1156 = vadd.f32 %v1023, %v1155
    %v1157 = vpop.f32.mrf.mxu0
    %v1158 = vpop.f32.mrf.mxu0
    %v1159 = vadd.f32 %v1023, %v1158
    %v1160 = vpop.f32.mrf.mxu0
    %1161 = vmatprep.mubr.bf16.mxu0 %v973
    %1162 = vmatmul.mubr.bf16.gmra.mxu0 %v972
    %v1163 = vpop.f32.mrf.mxu0
    %v1164 = vadd.f32 %v1023, %v1163
    %v1165 = vpop.f32.mrf.mxu0
    %v1166 = vpop.f32.mrf.mxu0
    %v1167 = vadd.f32 %v1023, %v1166
    %v1168 = vpop.f32.mrf.mxu0
    %1169 = vmatprep.mubr.bf16.mxu0 %v975
    %1170 = vmatmul.mubr.bf16.gmra.mxu0 %v974
    %v1171 = vpop.f32.mrf.mxu0
    %v1172 = vadd.f32 %v1023, %v1171
    %v1173 = vpop.f32.mrf.mxu0
    %v1174 = vpop.f32.mrf.mxu0
    %v1175 = vadd.f32 %v1023, %v1174
    %v1176 = vpop.f32.mrf.mxu0
    %1177 = vmatprep.mubr.bf16.mxu0 %v977
    %1178 = vmatmul.mubr.bf16.gmra.mxu0 %v976
    %v1179 = vpop.f32.mrf.mxu0
    %v1180 = vadd.f32 %v1023, %v1179
    %v1181 = vpop.f32.mrf.mxu0
    %v1182 = vpop.f32.mrf.mxu0
    %v1183 = vadd.f32 %v1023, %v1182
    %v1184 = vpop.f32.mrf.mxu0
    %1185 = vmatprep.mubr.bf16.mxu0 %v979
    %1186 = vmatmul.mubr.bf16.gmra.mxu0 %v978
    %v1187 = vpop.f32.mrf.mxu0
    %v1188 = vadd.f32 %v1023, %v1187
    %v1189 = vpop.f32.mrf.mxu0
    %v1190 = vpop.f32.mrf.mxu0
    %v1191 = vadd.f32 %v1023, %v1190
    %v1192 = vpop.f32.mrf.mxu0
    %1193 = vmatprep.mubr.bf16.mxu0 %v981
    %1194 = vmatmul.mubr.bf16.gmra.mxu0 %v980
    %v1195 = vpop.f32.mrf.mxu0
    %v1196 = vadd.f32 %v1023, %v1195
    %v1197 = vpop.f32.mrf.mxu0
    %v1198 = vpop.f32.mrf.mxu0
    %v1199 = vadd.f32 %v1023, %v1198
    %v1200 = vpop.f32.mrf.mxu0
    %1201 = vmatprep.mubr.bf16.mxu0 %v983
    %1202 = vmatmul.mubr.bf16.gmra.mxu0 %v982
    %v1203 = vpop.f32.mrf.mxu0
    %v1204 = vadd.f32 %v1023, %v1203
    %v1205 = vpop.f32.mrf.mxu0
    %v1206 = vpop.f32.mrf.mxu0
    %v1207 = vadd.f32 %v1023, %v1206
    %v1208 = vpop.f32.mrf.mxu0
    %1209 = vmatprep.mubr.bf16.mxu0 %v985
    %1210 = vmatmul.mubr.bf16.gmra.mxu0 %v984
    %v1211 = vpop.f32.mrf.mxu0
    %v1212 = vadd.f32 %v1023, %v1211
    %v1213 = vpop.f32.mrf.mxu0
    %v1214 = vpop.f32.mrf.mxu0
    %v1215 = vadd.f32 %v1023, %v1214
    %v1216 = vpop.f32.mrf.mxu0
    %1217 = vdwg.mxu0
    %v1218 = vmax.f32 %v1156, 0.0
    %v1219 = vmax.f32 %v1159, 0.0
    %v1220 = vmax.f32 %v1164, 0.0
    %v1221 = vmax.f32 %v1167, 0.0
    %v1222 = vmax.f32 %v1172, 0.0
    %v1223 = vmax.f32 %v1175, 0.0
    %v1224 = vmax.f32 %v1180, 0.0
    %v1225 = vmax.f32 %v1183, 0.0
    %v1226 = vmax.f32 %v1188, 0.0
    %v1227 = vmax.f32 %v1191, 0.0
    %v1228 = vmax.f32 %v1196, 0.0
    %v1229 = vmax.f32 %v1199, 0.0
    %v1230 = vmax.f32 %v1204, 0.0
    %v1231 = vmax.f32 %v1207, 0.0
    %v1232 = vmax.f32 %v1212, 0.0
    %v1233 = vmax.f32 %v1215, 0.0
    %v1234 = vpack.c.bf16 %v1219, %v1218
    %v1235 = vpack.c.bf16 %v1221, %v1220
    %v1236 = vpack.c.bf16 %v1223, %v1222
    %v1237 = vpack.c.bf16 %v1225, %v1224
    %v1238 = vpack.c.bf16 %v1227, %v1226
    %v1239 = vpack.c.bf16 %v1229, %v1228
    %v1240 = vpack.c.bf16 %v1231, %v1230
    %v1241 = vpack.c.bf16 %v1233, %v1232
    %v1242 = vunpack.i.l.bf16 %v1234
    %v1243 = vunpack.i.h.bf16 %v1234
    %v1244 = vmax.f32 %v1242, %v1243
    %v1245 = vrot.slane %v1244, 4
    %v1246 = vmax.f32 %v1244, %v1245
    %v1247 = vrot.slane %v1246, 2
    %v1248 = vmax.f32 %v1246, %v1247
    %v1249 = vrot.slane %v1248, 1
    %v1250 = vmax.f32 %v1248, %v1249
    %v1251 = vpack.i.bf16 %v1250, %v1250
    %v1252 = vunpack.i.l.bf16 %v1235
    %v1253 = vunpack.i.h.bf16 %v1235
    %v1254 = vmax.f32 %v1252, %v1253
    %v1255 = vrot.slane %v1254, 4
    %v1256 = vmax.f32 %v1254, %v1255
    %v1257 = vrot.slane %v1256, 2
    %v1258 = vmax.f32 %v1256, %v1257
    %v1259 = vrot.slane %v1258, 1
    %v1260 = vmax.f32 %v1258, %v1259
    %v1261 = vpack.i.bf16 %v1260, %v1260
    %v1262 = vunpack.i.l.bf16 %v1236
    %v1263 = vunpack.i.h.bf16 %v1236
    %v1264 = vmax.f32 %v1262, %v1263
    %v1265 = vrot.slane %v1264, 4
    %v1266 = vmax.f32 %v1264, %v1265
    %v1267 = vrot.slane %v1266, 2
    %v1268 = vmax.f32 %v1266, %v1267
    %v1269 = vrot.slane %v1268, 1
    %v1270 = vmax.f32 %v1268, %v1269
    %v1271 = vpack.i.bf16 %v1270, %v1270
    %v1272 = vunpack.i.l.bf16 %v1237
    %v1273 = vunpack.i.h.bf16 %v1237
    %v1274 = vmax.f32 %v1272, %v1273
    %v1275 = vrot.slane %v1274, 4
    %v1276 = vmax.f32 %v1274, %v1275
    %v1277 = vrot.slane %v1276, 2
    %v1278 = vmax.f32 %v1276, %v1277
    %v1279 = vrot.slane %v1278, 1
    %v1280 = vmax.f32 %v1278, %v1279
    %v1281 = vpack.i.bf16 %v1280, %v1280
    %v1282 = vunpack.i.l.bf16 %v1238
    %v1283 = vunpack.i.h.bf16 %v1238
    %v1284 = vmax.f32 %v1282, %v1283
    %v1285 = vrot.slane %v1284, 4
    %v1286 = vmax.f32 %v1284, %v1285
    %v1287 = vrot.slane %v1286, 2
    %v1288 = vmax.f32 %v1286, %v1287
    %v1289 = vrot.slane %v1288, 1
    %v1290 = vmax.f32 %v1288, %v1289
    %v1291 = vpack.i.bf16 %v1290, %v1290
    %v1292 = vunpack.i.l.bf16 %v1239
    %v1293 = vunpack.i.h.bf16 %v1239
    %v1294 = vmax.f32 %v1292, %v1293
    %v1295 = vrot.slane %v1294, 4
    %v1296 = vmax.f32 %v1294, %v1295
    %v1297 = vrot.slane %v1296, 2
    %v1298 = vmax.f32 %v1296, %v1297
    %v1299 = vrot.slane %v1298, 1
    %v1300 = vmax.f32 %v1298, %v1299
    %v1301 = vpack.i.bf16 %v1300, %v1300
    %v1302 = vunpack.i.l.bf16 %v1240
    %v1303 = vunpack.i.h.bf16 %v1240
    %v1304 = vmax.f32 %v1302, %v1303
    %v1305 = vrot.slane %v1304, 4
    %v1306 = vmax.f32 %v1304, %v1305
    %v1307 = vrot.slane %v1306, 2
    %v1308 = vmax.f32 %v1306, %v1307
    %v1309 = vrot.slane %v1308, 1
    %v1310 = vmax.f32 %v1308, %v1309
    %v1311 = vpack.i.bf16 %v1310, %v1310
    %v1312 = vunpack.i.l.bf16 %v1241
    %v1313 = vunpack.i.h.bf16 %v1241
    %v1314 = vmax.f32 %v1312, %v1313
    %v1315 = vrot.slane %v1314, 4
    %v1316 = vmax.f32 %v1314, %v1315
    %v1317 = vrot.slane %v1316, 2
    %v1318 = vmax.f32 %v1316, %v1317
    %v1319 = vrot.slane %v1318, 1
    %v1320 = vmax.f32 %v1318, %v1319
    %v1321 = vpack.i.bf16 %v1320, %v1320
    %v1322 = vld [vmem:[#allocation2] sm:$0xff]
    %v1323 = vunpack.c.l.bf16 %v1251
    %v1324 = vunpack.c.l.bf16 %v1261
    %v1325 = vunpack.c.l.bf16 %v1271
    %v1326 = vunpack.c.l.bf16 %v1281
    %v1327 = vunpack.c.l.bf16 %v1291
    %v1328 = vunpack.c.l.bf16 %v1301
    %v1329 = vunpack.c.l.bf16 %v1311
    %v1330 = vunpack.c.l.bf16 %v1321
    %vm1339 = vcmask 1041409
    %v1340 = vsel %vm1339, %v1324, %v1323
    %vm1341 = vcmask 1042434
    %v1342 = vsel %vm1341, %v1325, %v1340
    %vm1343 = vcmask 1043459
    %v1344 = vsel %vm1343, %v1326, %v1342
    %vm1345 = vcmask 1044484
    %v1346 = vsel %vm1345, %v1327, %v1344
    %vm1347 = vcmask 1045509
    %v1348 = vsel %vm1347, %v1328, %v1346
    %vm1349 = vcmask 1046534
    %v1350 = vsel %vm1349, %v1329, %v1348
    %vm1351 = vcmask 1047559
    %v1352 = vsel %vm1351, %v1330, %v1350
    %v1354 = vmax.f32 %v1322, %v1352
    %1355 = vst [vmem:[#allocation2] sm:$0xff] %v1354
    // Predicated region
    $region82: #{encoder_pointnet_forward.1} parent=1 // pred_check
      %p1356 = pneg %p114
    $region83: #{encoder_pointnet_forward.1} parent=1 // pred_check_branch
      %1358 = sbr.rel (%p1356) target = $region85
    $region84: #{encoder_pointnet_forward.1} parent=1 // pred_region
      %v1359 = vld [vmem:[#allocation2] sm:$0xff]
      %v1360 = vpack.c.bf16 %v1359, %v1359
      %v1361 = vld [vmem:[#allocation10] sm:$0xf]
      %v1362 = vld [vmem:[#allocation10 + $0x4] sm:$0xf]
      %v1363 = vld [vmem:[#allocation10 + $0x8] sm:$0xf]
      %v1364 = vld [vmem:[#allocation10 + $0xc] sm:$0xf]
      %v1365 = vld [vmem:[#allocation10 + $0x10] sm:$0xf]
      %v1366 = vld [vmem:[#allocation10 + $0x14] sm:$0xf]
      %v1367 = vld [vmem:[#allocation10 + $0x18] sm:$0xf]
      %v1368 = vld [vmem:[#allocation10 + $0x1c] sm:$0xf]
      %v1369 = vld [vmem:[#allocation10 + $0x20] sm:$0xf]
      %v1370 = vld [vmem:[#allocation10 + $0x24] sm:$0xf]
      %v1371 = vld [vmem:[#allocation10 + $0x28] sm:$0xf]
      %v1372 = vld [vmem:[#allocation10 + $0x2c] sm:$0xf]
      %v1373 = vld [vmem:[#allocation10 + $0x30] sm:$0xf]
      %v1374 = vld [vmem:[#allocation10 + $0x34] sm:$0xf]
      %v1375 = vld [vmem:[#allocation10 + $0x38] sm:$0xf]
      %v1376 = vld [vmem:[#allocation10 + $0x3c] sm:$0xf]
      %v1377 = vld [vmem:[%s12] sm:$0x1]
      %v1379 = vlaneseq
      %v1380 = vshrl.u32 %v1379, 7
      %v1381 = vsub.s32 0, %v1380
      %v1382 = vrot.slane %v1377, %v1381
      %v1400 = vunpack.c.l.b16 %v1361
      %v1401 = vunpack.c.l.b16 %v1362
      %v1402 = vunpack.c.l.b16 %v1363
      %v1403 = vunpack.c.l.b16 %v1364
      %v1404 = vunpack.c.l.b16 %v1365
      %v1405 = vunpack.c.l.b16 %v1366
      %v1406 = vunpack.c.l.b16 %v1367
      %v1407 = vunpack.c.l.b16 %v1368
      %v1408 = vunpack.c.l.b16 %v1369
      %v1409 = vunpack.c.l.b16 %v1370
      %v1410 = vunpack.c.l.b16 %v1371
      %v1411 = vunpack.c.l.b16 %v1372
      %v1412 = vunpack.c.l.b16 %v1373
      %v1413 = vunpack.c.l.b16 %v1374
      %v1414 = vunpack.c.l.b16 %v1375
      %v1415 = vunpack.c.l.b16 %v1376
      %v1416 = vpack.c.b16 %v1401, %v1400
      %v1417 = vpack.c.b16 %v1403, %v1402
      %v1418 = vpack.c.b16 %v1405, %v1404
      %v1419 = vpack.c.b16 %v1407, %v1406
      %v1420 = vpack.c.b16 %v1409, %v1408
      %v1421 = vpack.c.b16 %v1411, %v1410
      %v1422 = vpack.c.b16 %v1413, %v1412
      %v1423 = vpack.c.b16 %v1415, %v1414
      %1432 = vmatprep.subr.bf16.mxu0 0
      %1433 = vmatpush1.bf16.msra.mxu0 %v1423
      %1434 = vmatprep.subr.bf16.mxu0 0
      %1435 = vmatpush1.bf16.msra.mxu0 %v1422
      %1436 = vmatprep.subr.bf16.mxu0 0
      %1437 = vmatpush1.bf16.msra.mxu0 %v1421
      %1438 = vmatprep.subr.bf16.mxu0 0
      %1439 = vmatpush1.bf16.msra.mxu0 %v1420
      %1440 = vmatprep.subr.bf16.mxu0 0
      %1441 = vmatpush1.bf16.msra.mxu0 %v1419
      %1442 = vmatprep.subr.bf16.mxu0 0
      %1443 = vmatpush1.bf16.msra.mxu0 %v1418
      %1444 = vmatprep.subr.bf16.mxu0 0
      %1445 = vmatpush1.bf16.msra.mxu0 %v1417
      %1446 = vmatprep.subr.bf16.mxu0 0
      %1447 = vmatpush1.bf16.msra.mxu0 %v1416
      %1448 = vmatprep.subr.bf16.mxu0 0
      %1449 = vmatpush2.bf16.msra.mxu0 0
      %1450 = vmatprep.subr.bf16.mxu0 0
      %1451 = vmatpush2.bf16.msra.mxu0 0
      %1452 = vmatprep.subr.bf16.mxu0 0
      %1453 = vmatpush2.bf16.msra.mxu0 0
      %1454 = vmatprep.subr.bf16.mxu0 0
      %1455 = vmatpush2.bf16.msra.mxu0 0
      %1456 = vmatprep.subr.bf16.mxu0 0
      %1457 = vmatpush2.bf16.msra.mxu0 0
      %1458 = vmatprep.subr.bf16.mxu0 0
      %1459 = vmatpush2.bf16.msra.mxu0 0
      %1460 = vmatprep.subr.bf16.mxu0 0
      %1461 = vmatpush2.bf16.msra.mxu0 0
      %1462 = vmatprep.subr.bf16.mxu0 0
      %1463 = vmatpush2.bf16.msra.mxu0 0
      %1464 = vmatprep.mubr.bf16.mxu0 0
      %1465 = vmatmul.mubr.bf16.gmra.mxu0 %v1360
      %v1466 = vpop.f32.mrf.mxu0
      %v1467 = vadd.f32 %v1382, %v1466
      %v1468 = vpop.f32.mrf.mxu0
      %v1469 = vpop.f32.mrf.mxu0
      %v1470 = vpop.f32.mrf.mxu0
      %1471 = vdwg.mxu0
      %v1472 = vmul.f32 %v1467, 0.5
      %v1473 = vmul.f32 %v1472, 1.442695
      %v1474 = vpow.pop %v1473
      %v1475 = vld [vmem:[%s13] sm:$0xff]
      %1477 = vrot.lane.b32.xlu0 %v1475, 64
      %v1478 = vpop.permute.xlu0 %1477
      %v1480 = vmul.f32 %v1474, %v1478
      %1482 = vrot.lane.b32.xlu0 %v1480, 64
      %v1483 = vpop.permute.xlu0 %1482
      %v1485 = vadd.f32 %v1467, %v1483
      %1487 = vrot.lane.b32.xlu0 %v1467, 64
      %v1488 = vpop.permute.xlu0 %1487
      %vm1490 = vcmask 523264
      %v1491 = vsel %vm1490, %v1485, %v1488
      %v1492 = vsel %vm1490, %v1488, 0.0
      %1493 = vst [vmem:[%s14] sm:$0xff] %v1491
      %1494 = vst [vmem:[%s14 + $0x8] sm:$0xff] %v1492
    $region85: #{encoder_pointnet_forward.1} parent=1 // pred_fallthru
      _
    // Predicated region
    $region86: #{encoder_pointnet_forward.1} parent=1 // pred_check
      _
    $region87: #{encoder_pointnet_forward.1} parent=1 // pred_check_branch
      %1496 = sbr.rel (0) target = $region89
    $region88: #{encoder_pointnet_forward.1} parent=1 // pred_region
      _
    $region89: #{encoder_pointnet_forward.1} parent=1 // pred_fallthru
      _
    // Predicated region
    $region90: #{encoder_pointnet_forward.1} parent=1 // pred_check
      _
    $region91: #{encoder_pointnet_forward.1} parent=1 // pred_check_branch
      %1498 = sbr.rel (0) target = $region93
    $region92: #{encoder_pointnet_forward.1} parent=1 // pred_region
      _
    $region93: #{encoder_pointnet_forward.1} parent=1 // pred_fallthru
      _
    %1499 = vsyncpa [#allocation4], 1
    %1500 = vsyncpa [#allocation6], 1
    %1501 = vsyncpa [#allocation9], 1

</llo_original>
